<compile_context>
chip_gen: v7x
topology: tpu7x:2x2x1
jax: 0.10.0
libtpu: 0.0.40
codegen_flags: <defaults>
</compile_context>

<pallas_src>
import math

import jax
import jax.numpy as jnp
import numpy as np
from jax.experimental import pallas as pl
from jax.experimental.pallas import tpu as pltpu

# ----------------------------- configuration -------------------------------
# Small shapes consistent with ImplicitNetworkGrid.__init__.
FEATURE_VECTOR_SIZE = 15          # feature_vector_size
D_IN = 3                          # d_in
D_OUT = 1                         # d_out
HIDDEN = [64, 64, 64]             # dims
SKIP_IN = (2,)                    # skip_in
GEO_BIAS = 1.0                    # bias
INSIDE_OUTSIDE = False
DIVIDE_FACTOR = 1.5

# HashEncoder config (small synthetic version of the hash grid).
NUM_LEVELS = 4                    # num_levels
LEVEL_DIM = 2                     # level_dim
BASE_SIZE = 16                    # base_size
END_SIZE = 64                     # end_size
LOG2_HASHMAP = 10                 # logmap
GRID_FEATURE_DIM = NUM_LEVELS * LEVEL_DIM

SOFTPLUS_BETA = 100.0
SOFTPLUS_THRESHOLD = 20.0         # PyTorch nn.Softplus default threshold

TILE_N = 2048                     # points per grid step (sweep 512..4096)


def _round_up(x, m):
    return (x + m - 1) // m * m


# --------------------------- parameter creation -----------------------------
def build_mlp_dims():
    dims = [D_IN] + HIDDEN + [D_OUT + FEATURE_VECTOR_SIZE]
    dims[0] += GRID_FEATURE_DIM
    num_layers = len(dims)
    in_dims, out_dims = [], []
    for l in range(num_layers - 1):
        if l + 1 in SKIP_IN:
            out_d = dims[l + 1] - dims[0]
        else:
            out_d = dims[l + 1]
        in_dims.append(dims[l])
        out_dims.append(out_d)
    return dims, in_dims, out_dims


def init_mlp_params(key):
    """Deterministic geometric init (weight_norm at init == plain linear)."""
    dims, in_dims, out_dims = build_mlp_dims()
    num_lin = len(in_dims)
    weights, biases = [], []
    for l in range(num_lin):
        key, wk = jax.random.split(key)
        in_d, out_d = in_dims[l], out_dims[l]
        if l == num_lin - 1:  # last layer
            mean = math.sqrt(math.pi) / math.sqrt(dims[l])
            if INSIDE_OUTSIDE:
                mean = -mean
                b_val = GEO_BIAS
            else:
                b_val = -GEO_BIAS
            w = mean + 1e-4 * jax.random.normal(wk, (in_d, out_d), jnp.float32)
            b = jnp.full((1, out_d), b_val, jnp.float32)
        else:
            std = math.sqrt(2.0) / math.sqrt(out_d)
            w = std * jax.random.normal(wk, (in_d, out_d), jnp.float32)
            b = jnp.zeros((1, out_d), jnp.float32)
        weights.append(w)
        biases.append(b)
    return weights, biases


def init_hash_tables(key):
    """torch-ngp style per-level hash tables, uniform(-1e-4, 1e-4)."""
    per_level_scale = 2.0 ** (math.log2(END_SIZE / BASE_SIZE) / (NUM_LEVELS - 1))
    tables = []
    for l in range(NUM_LEVELS):
        res_py = int(math.ceil(BASE_SIZE * per_level_scale ** l))
        size = min(2 ** LOG2_HASHMAP, res_py ** 3)
        size = int(math.ceil(size / 8) * 8)
        key, sub = jax.random.split(key)
        tables.append(
            jax.random.uniform(sub, (size, LEVEL_DIM), jnp.float32, -1e-4, 1e-4)
        )
    return tables, per_level_scale


# -------------------------- hash grid encoding (JAX) ------------------------
# TODO(synk): data-dependent hash-table gather + trilinear interpolation is
# kept in plain JAX; fusing it into the Pallas kernel (tables fit in VMEM)
# is the next step once the MLP path is saturated.
_PRIMES = (np.uint32(1), np.uint32(2654435761), np.uint32(805459861))


def hash_encode(x01, tables, per_level_scale):
    """x01: (N, 3) in [0, 1].  Returns (N, NUM_LEVELS * LEVEL_DIM)."""
    n = x01.shape[0]
    feats = []
    for l, table in enumerate(tables):
        hashmap_size = table.shape[0]
        scale = BASE_SIZE * (per_level_scale ** l) - 1.0
        resolution = int(math.ceil(scale)) + 1
        stride = resolution + 1  # align_corners=False
        use_direct = stride ** 3 <= hashmap_size

        pos = x01 * jnp.float32(scale) + 0.5
        pos_grid_f = jnp.floor(pos)
        frac = pos - pos_grid_f
        pos_grid = pos_grid_f.astype(jnp.uint32)

        acc = jnp.zeros((n, table.shape[1]), jnp.float32)
        for corner in range(8):
            w = jnp.ones((n,), jnp.float32)
            coords = []
            for d in range(3):
                if (corner >> d) & 1:
                    w = w * frac[:, d]
                    coords.append(pos_grid[:, d] + np.uint32(1))
                else:
                    w = w * (1.0 - frac[:, d])
                    coords.append(pos_grid[:, d])
            if use_direct:
                index = (coords[0]
                         + coords[1] * np.uint32(stride)
                         + coords[2] * np.uint32(stride * stride))
            else:
                index = ((coords[0] * _PRIMES[0])
                         ^ (coords[1] * _PRIMES[1])
                         ^ (coords[2] * _PRIMES[2]))
            index = (index % np.uint32(hashmap_size)).astype(jnp.int32)
            acc = acc + w[:, None] * table[index]
        feats.append(acc)
    return jnp.concatenate(feats, axis=-1)


# ------------------------------ numerics helpers ------------------------------
def softplus_f32(x):
    """PyTorch nn.Softplus(beta=100, threshold=20) in f32."""
    bx = SOFTPLUS_BETA * x
    safe = jnp.minimum(bx, SOFTPLUS_THRESHOLD)
    return jnp.where(bx > SOFTPLUS_THRESHOLD, x,
                     jnp.log1p(jnp.exp(safe)) / SOFTPLUS_BETA)


# --------------------------- parameter preparation ---------------------------
def prepare_params(weights, biases, dot_dtype=jnp.float32):
    """Split weights so no concatenate is needed in the kernel.

    Layer 0:   cat(pts, feat) @ W0          == pts@W0p + feat@W0f
    Skip (l=2) cat(x, pts, feat)/sqrt2 @ W2 == x@W2x + pts@W2p + feat@W2f
               with the 1/sqrt(2) folded into W2x/W2p/W2f here (once).
    Weights are cast to `dot_dtype` (bf16 on v6e/v7x); biases stay f32.
    """
    assert tuple(SKIP_IN) == (2,) and len(HIDDEN) == 3, "kernel specialized"
    w0, w1, w2, w3 = weights
    b0, b1, b2, b3 = biases
    d0 = D_IN + GRID_FEATURE_DIM                 # 11
    h_skip = w2.shape[0] - d0                    # 53
    inv = 1.0 / math.sqrt(2.0)
    cast = lambda w: w.astype(dot_dtype)
    return dict(
        w0p=cast(w0[:D_IN]), w0f=cast(w0[D_IN:]), b0=b0,
        w1=cast(w1), b1=b1,
        w2x=cast(w2[:h_skip] * inv),
        w2p=cast(w2[h_skip:h_skip + D_IN] * inv),
        w2f=cast(w2[h_skip + D_IN:] * inv),
        b2=b2,
        w3=cast(w3), b3=b3,
    )


# ------------------------------ Pallas kernel --------------------------------
def make_mlp_kernel(dot_dtype):
    def dot(a, w):
        return jnp.dot(a.astype(dot_dtype), w,
                       preferred_element_type=jnp.float32)

    def kernel(pts_ref, feat_ref,
               w0p_ref, w0f_ref, b0_ref,
               w1_ref, b1_ref,
               w2x_ref, w2p_ref, w2f_ref, b2_ref,
               w3_ref, b3_ref,
               o_ref):
        pts = pts_ref[...]                       # (T, 3)   dot_dtype
        feat = feat_ref[...]                     # (T, 8)   dot_dtype

        # layer 0: split-input matmul (no concat)
        h = softplus_f32(dot(pts, w0p_ref[...]) + dot(feat, w0f_ref[...])
                         + b0_ref[...])
        # layer 1
        h = softplus_f32(dot(h, w1_ref[...]) + b1_ref[...])
        # layer 2 (skip): cat([h, pts, feat])/sqrt2 @ W2, as split matmuls
        # with the 1/sqrt2 pre-folded into the weights.
        h = softplus_f32(dot(h, w2x_ref[...]) + dot(pts, w2p_ref[...])
                         + dot(feat, w2f_ref[...]) + b2_ref[...])
        # layer 3 (output, no activation)
        out = dot(h, w3_ref[...]) + b3_ref[...]
        o_ref[...] = out.astype(o_ref.dtype)

    return kernel


def mlp_forward(points, feature, params, tile_n=TILE_N):
    """points (N,3) f32, feature (N,8) f32, params from prepare_params."""
    n = points.shape[0]
    d_out = params["w3"].shape[1]
    dot_dtype = params["w3"].dtype

    # Tile sizing: large tiles amortize per-step overhead; pad N to a multiple
    # of the tile (pad rows are sliced off after the call).
    tile = min(tile_n, _round_up(n, 16))
    n_pad = _round_up(n, tile)
    if n_pad != n:
        pad = ((0, n_pad - n), (0, 0))
        points = jnp.pad(points, pad)
        feature = jnp.pad(feature, pad)
    points = points.astype(dot_dtype)
    feature = feature.astype(dot_dtype)

    rep = lambda shape: pl.BlockSpec(shape, lambda i: (0, 0))
    in_specs = [
        pl.BlockSpec((tile, points.shape[1]), lambda i: (i, 0)),
        pl.BlockSpec((tile, feature.shape[1]), lambda i: (i, 0)),
        rep(params["w0p"].shape), rep(params["w0f"].shape), rep(params["b0"].shape),
        rep(params["w1"].shape), rep(params["b1"].shape),
        rep(params["w2x"].shape), rep(params["w2p"].shape),
        rep(params["w2f"].shape), rep(params["b2"].shape),
        rep(params["w3"].shape), rep(params["b3"].shape),
    ]

    out = pl.pallas_call(
        make_mlp_kernel(dot_dtype),
        out_shape=jax.ShapeDtypeStruct((n_pad, d_out), jnp.float32),
        grid=(n_pad // tile,),
        in_specs=in_specs,
        out_specs=pl.BlockSpec((tile, d_out), lambda i: (i, 0)),
        compiler_params=pltpu.CompilerParams(
            dimension_semantics=("parallel",)),
    )(points, feature,
      params["w0p"], params["w0f"], params["b0"],
      params["w1"], params["b1"],
      params["w2x"], params["w2p"], params["w2f"], params["b2"],
      params["w3"], params["b3"])
    return out[:n]


# ------------------------------ module forward -------------------------------
def implicit_network_grid_forward(points, params, tables, per_level_scale,
                                  tile_n=TILE_N):
    """Mirror of ImplicitNetworkGrid.forward (multires=0, use_grid_feature)."""
    # HashEncoder maps [-bound, bound] -> [0, 1] internally (bound = 1).
    x01 = (points / DIVIDE_FACTOR + 1.0) * 0.5
    feature = hash_encode(x01, tables, per_level_scale)
    # points & feature are passed separately: no concat(points, feature) in HBM.
    return mlp_forward(points, feature, params, tile_n=tile_n)


# Pure-JAX reference (original concat formulation, unsplit weights).
def mlp_reference(points, feature, weights, biases):
    x_in = jnp.concatenate([points, feature], axis=-1)
    x = x_in
    num_lin = len(weights)
    for l in range(num_lin):
        if l in SKIP_IN:
            x = jnp.concatenate([x, x_in], axis=1) / math.sqrt(2.0)
        x = jnp.dot(x, weights[l],
                    precision=jax.lax.Precision.HIGHEST) + biases[l]
        if l < num_lin - 1:
            x = softplus_f32(x)
    return x


# ----------------------------------- main ------------------------------------
if __name__ == "__main__":
    key = jax.random.PRNGKey(0)
    k_pts, k_mlp, k_hash = jax.random.split(key, 3)

    N = 300  # deliberately not a multiple of the tile (exercises padding)
    points = jax.random.uniform(k_pts, (N, D_IN), jnp.float32, -1.0, 1.0)

    weights, biases = init_mlp_params(k_mlp)
    tables, per_level_scale = init_hash_tables(k_hash)

    # Shared encoding + reference.
    x01 = (points / DIVIDE_FACTOR + 1.0) * 0.5
    feature = hash_encode(x01, tables, per_level_scale)
    ref = jax.block_until_ready(mlp_reference(points, feature, weights, biases))

    # 1) f32 matmul path, small tile (multi-step grid + tail padding path).
    params_f32 = prepare_params(weights, biases, jnp.float32)
    out_f32 = jax.block_until_ready(
        mlp_forward(points, feature, params_f32, tile_n=128))
    assert out_f32.shape == (N, D_OUT + FEATURE_VECTOR_SIZE), out_f32.shape
    assert bool(jnp.all(jnp.isfinite(out_f32)))
    np.testing.assert_allclose(np.asarray(out_f32), np.asarray(ref),
                               rtol=5e-3, atol=5e-3)

    # 2) bf16 matmul path (v6e/v7x MXU fast path), default large tile, full
    #    module forward (hash encode + Pallas MLP).
    params_bf16 = prepare_params(weights, biases, jnp.bfloat16)
    out_bf16 = jax.block_until_ready(
        implicit_network_grid_forward(points, params_bf16, tables,
                                      per_level_scale))
    assert out_bf16.shape == (N, D_OUT + FEATURE_VECTOR_SIZE), out_bf16.shape
    assert bool(jnp.all(jnp.isfinite(out_bf16)))
    np.testing.assert_allclose(np.asarray(out_bf16), np.asarray(ref),
                               rtol=3e-2, atol=3e-2)

    print("KERNEL_OK")
</pallas_src>

<mosaic_0001>
module attributes {stable_mosaic.version = 11 : i64} {
  func.func @kernel(%arg0: i32, %arg1: memref<128x3xf32, #tpu.memory_space<vmem>>, %arg2: memref<128x8xf32, #tpu.memory_space<vmem>>, %arg3: memref<3x64xf32, #tpu.memory_space<vmem>>, %arg4: memref<8x64xf32, #tpu.memory_space<vmem>>, %arg5: memref<1x64xf32, #tpu.memory_space<vmem>>, %arg6: memref<64x53xf32, #tpu.memory_space<vmem>>, %arg7: memref<1x53xf32, #tpu.memory_space<vmem>>, %arg8: memref<53x64xf32, #tpu.memory_space<vmem>>, %arg9: memref<3x64xf32, #tpu.memory_space<vmem>>, %arg10: memref<8x64xf32, #tpu.memory_space<vmem>>, %arg11: memref<1x64xf32, #tpu.memory_space<vmem>>, %arg12: memref<64x16xf32, #tpu.memory_space<vmem>>, %arg13: memref<1x16xf32, #tpu.memory_space<vmem>>, %arg14: memref<128x16xf32, #tpu.memory_space<vmem>>) attributes {dimension_semantics = [#tpu.dimension_semantics<parallel>], iteration_bounds = array<i64: 3>, scalar_prefetch = 0 : i64, scratch_operands = 0 : i64, tpu.core_type = #tpu.core_type<tc>, window_params = [{transform_indices = @transform_0, window_bounds = array<i64: 128, 3>}, {transform_indices = @transform_1, window_bounds = array<i64: 128, 8>}, {pipeline_mode = #tpu.pipeline_mode<synchronous>, transform_indices = @transform_2, window_bounds = array<i64: 3, 64>}, {pipeline_mode = #tpu.pipeline_mode<synchronous>, transform_indices = @transform_3, window_bounds = array<i64: 8, 64>}, {pipeline_mode = #tpu.pipeline_mode<synchronous>, transform_indices = @transform_4, window_bounds = array<i64: 1, 64>}, {pipeline_mode = #tpu.pipeline_mode<synchronous>, transform_indices = @transform_5, window_bounds = array<i64: 64, 53>}, {pipeline_mode = #tpu.pipeline_mode<synchronous>, transform_indices = @transform_6, window_bounds = array<i64: 1, 53>}, {pipeline_mode = #tpu.pipeline_mode<synchronous>, transform_indices = @transform_7, window_bounds = array<i64: 53, 64>}, {pipeline_mode = #tpu.pipeline_mode<synchronous>, transform_indices = @transform_8, window_bounds = array<i64: 3, 64>}, {pipeline_mode = #tpu.pipeline_mode<synchronous>, transform_indices = @transform_9, window_bounds = array<i64: 8, 64>}, {pipeline_mode = #tpu.pipeline_mode<synchronous>, transform_indices = @transform_10, window_bounds = array<i64: 1, 64>}, {pipeline_mode = #tpu.pipeline_mode<synchronous>, transform_indices = @transform_11, window_bounds = array<i64: 64, 16>}, {pipeline_mode = #tpu.pipeline_mode<synchronous>, transform_indices = @transform_12, window_bounds = array<i64: 1, 16>}, {transform_indices = @transform_13, window_bounds = array<i64: 128, 16>}]} {
    %c0 = arith.constant 0 : index
    %c0_0 = arith.constant 0 : index
    %0 = vector.load %arg1[%c0, %c0_0] : memref<128x3xf32, #tpu.memory_space<vmem>>, vector<128x3xf32>
    %c0_1 = arith.constant 0 : index
    %c0_2 = arith.constant 0 : index
    %1 = vector.load %arg2[%c0_1, %c0_2] : memref<128x8xf32, #tpu.memory_space<vmem>>, vector<128x8xf32>
    %c0_3 = arith.constant 0 : index
    %c0_4 = arith.constant 0 : index
    %2 = vector.load %arg3[%c0_3, %c0_4] : memref<3x64xf32, #tpu.memory_space<vmem>>, vector<3x64xf32>
    %cst = arith.constant dense<0.000000e+00> : vector<128x64xf32>
    %3 = tpu.matmul %0, %2, %cst {dimension_numbers = #tpu.dot_dimension_numbers<[1], [0], [0], [1], [0, 0, 1, 1], [], []>} : vector<128x3xf32>, vector<3x64xf32>, vector<128x64xf32> -> vector<128x64xf32>
    %c0_5 = arith.constant 0 : index
    %c0_6 = arith.constant 0 : index
    %4 = vector.load %arg4[%c0_5, %c0_6] : memref<8x64xf32, #tpu.memory_space<vmem>>, vector<8x64xf32>
    %cst_7 = arith.constant dense<0.000000e+00> : vector<128x64xf32>
    %5 = tpu.matmul %1, %4, %cst_7 {dimension_numbers = #tpu.dot_dimension_numbers<[1], [0], [0], [1], [0, 0, 1, 1], [], []>} : vector<128x8xf32>, vector<8x64xf32>, vector<128x64xf32> -> vector<128x64xf32>
    %6 = arith.addf %3, %5 : vector<128x64xf32>
    %c0_8 = arith.constant 0 : index
    %c0_9 = arith.constant 0 : index
    %7 = vector.load %arg5[%c0_8, %c0_9] : memref<1x64xf32, #tpu.memory_space<vmem>>, vector<1x64xf32>
    %8 = vector.broadcast %7 : vector<1x64xf32> to vector<128x64xf32>
    %9 = arith.addf %6, %8 : vector<128x64xf32>
    %cst_10 = arith.constant 1.000000e+02 : f32
    %10 = vector.broadcast %cst_10 : f32 to vector<128x64xf32>
    %11 = arith.mulf %10, %9 : vector<128x64xf32>
    %cst_11 = arith.constant 2.000000e+01 : f32
    %12 = vector.broadcast %cst_11 : f32 to vector<128x64xf32>
    %13 = arith.minimumf %11, %12 : vector<128x64xf32>
    %cst_12 = arith.constant 2.000000e+01 : f32
    %14 = vector.broadcast %cst_12 : f32 to vector<128x64xf32>
    %15 = arith.cmpf ogt, %11, %14 : vector<128x64xf32>
    %16 = math.exp %13 : vector<128x64xf32>
    %17 = math.log1p %16 : vector<128x64xf32>
    %cst_13 = arith.constant 1.000000e+02 : f32
    %18 = vector.broadcast %cst_13 : f32 to vector<128x64xf32>
    %19 = arith.divf %17, %18 : vector<128x64xf32>
    %20 = arith.select %15, %9, %19 : vector<128x64xi1>, vector<128x64xf32>
    %c0_14 = arith.constant 0 : index
    %c0_15 = arith.constant 0 : index
    %21 = vector.load %arg6[%c0_14, %c0_15] : memref<64x53xf32, #tpu.memory_space<vmem>>, vector<64x53xf32>
    %cst_16 = arith.constant dense<0.000000e+00> : vector<128x53xf32>
    %22 = tpu.matmul %20, %21, %cst_16 {dimension_numbers = #tpu.dot_dimension_numbers<[1], [0], [0], [1], [0, 0, 1, 1], [], []>} : vector<128x64xf32>, vector<64x53xf32>, vector<128x53xf32> -> vector<128x53xf32>
    %c0_17 = arith.constant 0 : index
    %c0_18 = arith.constant 0 : index
    %23 = vector.load %arg7[%c0_17, %c0_18] : memref<1x53xf32, #tpu.memory_space<vmem>>, vector<1x53xf32>
    %24 = vector.broadcast %23 : vector<1x53xf32> to vector<128x53xf32>
    %25 = arith.addf %22, %24 : vector<128x53xf32>
    %cst_19 = arith.constant 1.000000e+02 : f32
    %26 = vector.broadcast %cst_19 : f32 to vector<128x53xf32>
    %27 = arith.mulf %26, %25 : vector<128x53xf32>
    %cst_20 = arith.constant 2.000000e+01 : f32
    %28 = vector.broadcast %cst_20 : f32 to vector<128x53xf32>
    %29 = arith.minimumf %27, %28 : vector<128x53xf32>
    %cst_21 = arith.constant 2.000000e+01 : f32
    %30 = vector.broadcast %cst_21 : f32 to vector<128x53xf32>
    %31 = arith.cmpf ogt, %27, %30 : vector<128x53xf32>
    %32 = math.exp %29 : vector<128x53xf32>
    %33 = math.log1p %32 : vector<128x53xf32>
    %cst_22 = arith.constant 1.000000e+02 : f32
    %34 = vector.broadcast %cst_22 : f32 to vector<128x53xf32>
    %35 = arith.divf %33, %34 : vector<128x53xf32>
    %36 = arith.select %31, %25, %35 : vector<128x53xi1>, vector<128x53xf32>
    %c0_23 = arith.constant 0 : index
    %c0_24 = arith.constant 0 : index
    %37 = vector.load %arg8[%c0_23, %c0_24] : memref<53x64xf32, #tpu.memory_space<vmem>>, vector<53x64xf32>
    %cst_25 = arith.constant dense<0.000000e+00> : vector<128x64xf32>
    %38 = tpu.matmul %36, %37, %cst_25 {dimension_numbers = #tpu.dot_dimension_numbers<[1], [0], [0], [1], [0, 0, 1, 1], [], []>} : vector<128x53xf32>, vector<53x64xf32>, vector<128x64xf32> -> vector<128x64xf32>
    %c0_26 = arith.constant 0 : index
    %c0_27 = arith.constant 0 : index
    %39 = vector.load %arg9[%c0_26, %c0_27] : memref<3x64xf32, #tpu.memory_space<vmem>>, vector<3x64xf32>
    %cst_28 = arith.constant dense<0.000000e+00> : vector<128x64xf32>
    %40 = tpu.matmul %0, %39, %cst_28 {dimension_numbers = #tpu.dot_dimension_numbers<[1], [0], [0], [1], [0, 0, 1, 1], [], []>} : vector<128x3xf32>, vector<3x64xf32>, vector<128x64xf32> -> vector<128x64xf32>
    %41 = arith.addf %38, %40 : vector<128x64xf32>
    %c0_29 = arith.constant 0 : index
    %c0_30 = arith.constant 0 : index
    %42 = vector.load %arg10[%c0_29, %c0_30] : memref<8x64xf32, #tpu.memory_space<vmem>>, vector<8x64xf32>
    %cst_31 = arith.constant dense<0.000000e+00> : vector<128x64xf32>
    %43 = tpu.matmul %1, %42, %cst_31 {dimension_numbers = #tpu.dot_dimension_numbers<[1], [0], [0], [1], [0, 0, 1, 1], [], []>} : vector<128x8xf32>, vector<8x64xf32>, vector<128x64xf32> -> vector<128x64xf32>
    %44 = arith.addf %41, %43 : vector<128x64xf32>
    %c0_32 = arith.constant 0 : index
    %c0_33 = arith.constant 0 : index
    %45 = vector.load %arg11[%c0_32, %c0_33] : memref<1x64xf32, #tpu.memory_space<vmem>>, vector<1x64xf32>
    %46 = vector.broadcast %45 : vector<1x64xf32> to vector<128x64xf32>
    %47 = arith.addf %44, %46 : vector<128x64xf32>
    %cst_34 = arith.constant 1.000000e+02 : f32
    %48 = vector.broadcast %cst_34 : f32 to vector<128x64xf32>
    %49 = arith.mulf %48, %47 : vector<128x64xf32>
    %cst_35 = arith.constant 2.000000e+01 : f32
    %50 = vector.broadcast %cst_35 : f32 to vector<128x64xf32>
    %51 = arith.minimumf %49, %50 : vector<128x64xf32>
    %cst_36 = arith.constant 2.000000e+01 : f32
    %52 = vector.broadcast %cst_36 : f32 to vector<128x64xf32>
    %53 = arith.cmpf ogt, %49, %52 : vector<128x64xf32>
    %54 = math.exp %51 : vector<128x64xf32>
    %55 = math.log1p %54 : vector<128x64xf32>
    %cst_37 = arith.constant 1.000000e+02 : f32
    %56 = vector.broadcast %cst_37 : f32 to vector<128x64xf32>
    %57 = arith.divf %55, %56 : vector<128x64xf32>
    %58 = arith.select %53, %47, %57 : vector<128x64xi1>, vector<128x64xf32>
    %c0_38 = arith.constant 0 : index
    %c0_39 = arith.constant 0 : index
    %59 = vector.load %arg12[%c0_38, %c0_39] : memref<64x16xf32, #tpu.memory_space<vmem>>, vector<64x16xf32>
    %cst_40 = arith.constant dense<0.000000e+00> : vector<128x16xf32>
    %60 = tpu.matmul %58, %59, %cst_40 {dimension_numbers = #tpu.dot_dimension_numbers<[1], [0], [0], [1], [0, 0, 1, 1], [], []>} : vector<128x64xf32>, vector<64x16xf32>, vector<128x16xf32> -> vector<128x16xf32>
    %c0_41 = arith.constant 0 : index
    %c0_42 = arith.constant 0 : index
    %61 = vector.load %arg13[%c0_41, %c0_42] : memref<1x16xf32, #tpu.memory_space<vmem>>, vector<1x16xf32>
    %62 = vector.broadcast %61 : vector<1x16xf32> to vector<128x16xf32>
    %63 = arith.addf %60, %62 : vector<128x16xf32>
    %c0_43 = arith.constant 0 : index
    %c0_44 = arith.constant 0 : index
    %64 = vector.load %arg14[%c0_43, %c0_44] : memref<128x16xf32, #tpu.memory_space<vmem>>, vector<128x16xf32>
    tpu.vector_store %arg14[%c0_43, %c0_44], %63 {strides = array<i32>} : memref<128x16xf32, #tpu.memory_space<vmem>>, vector<128x16xf32>,
    return
  }
  func.func @transform_0(%arg0: i32) -> (i32, i32) {
    %c0_i32 = arith.constant 0 : i32
    %c0_i32_0 = arith.constant 0 : i32
    return %arg0, %c0_i32 : i32, i32
  }
  func.func @transform_1(%arg0: i32) -> (i32, i32) {
    %c0_i32 = arith.constant 0 : i32
    %c0_i32_0 = arith.constant 0 : i32
    return %arg0, %c0_i32 : i32, i32
  }
  func.func @transform_2(%arg0: i32) -> (i32, i32) {
    %c0_i32 = arith.constant 0 : i32
    %c0_i32_0 = arith.constant 0 : i32
    %c0_i32_1 = arith.constant 0 : i32
    return %c0_i32, %c0_i32_0 : i32, i32
  }
  func.func @transform_3(%arg0: i32) -> (i32, i32) {
    %c0_i32 = arith.constant 0 : i32
    %c0_i32_0 = arith.constant 0 : i32
    %c0_i32_1 = arith.constant 0 : i32
    return %c0_i32, %c0_i32_0 : i32, i32
  }
  func.func @transform_4(%arg0: i32) -> (i32, i32) {
    %c0_i32 = arith.constant 0 : i32
    %c0_i32_0 = arith.constant 0 : i32
    %c0_i32_1 = arith.constant 0 : i32
    return %c0_i32, %c0_i32_0 : i32, i32
  }
  func.func @transform_5(%arg0: i32) -> (i32, i32) {
    %c0_i32 = arith.constant 0 : i32
    %c0_i32_0 = arith.constant 0 : i32
    %c0_i32_1 = arith.constant 0 : i32
    return %c0_i32, %c0_i32_0 : i32, i32
  }
  func.func @transform_6(%arg0: i32) -> (i32, i32) {
    %c0_i32 = arith.constant 0 : i32
    %c0_i32_0 = arith.constant 0 : i32
    %c0_i32_1 = arith.constant 0 : i32
    return %c0_i32, %c0_i32_0 : i32, i32
  }
  func.func @transform_7(%arg0: i32) -> (i32, i32) {
    %c0_i32 = arith.constant 0 : i32
    %c0_i32_0 = arith.constant 0 : i32
    %c0_i32_1 = arith.constant 0 : i32
    return %c0_i32, %c0_i32_0 : i32, i32
  }
  func.func @transform_8(%arg0: i32) -> (i32, i32) {
    %c0_i32 = arith.constant 0 : i32
    %c0_i32_0 = arith.constant 0 : i32
    %c0_i32_1 = arith.constant 0 : i32
    return %c0_i32, %c0_i32_0 : i32, i32
  }
  func.func @transform_9(%arg0: i32) -> (i32, i32) {
    %c0_i32 = arith.constant 0 : i32
    %c0_i32_0 = arith.constant 0 : i32
    %c0_i32_1 = arith.constant 0 : i32
    return %c0_i32, %c0_i32_0 : i32, i32
  }
  func.func @transform_10(%arg0: i32) -> (i32, i32) {
    %c0_i32 = arith.constant 0 : i32
    %c0_i32_0 = arith.constant 0 : i32
    %c0_i32_1 = arith.constant 0 : i32
    return %c0_i32, %c0_i32_0 : i32, i32
  }
  func.func @transform_11(%arg0: i32) -> (i32, i32) {
    %c0_i32 = arith.constant 0 : i32
    %c0_i32_0 = arith.constant 0 : i32
    %c0_i32_1 = arith.constant 0 : i32
    return %c0_i32, %c0_i32_0 : i32, i32
  }
  func.func @transform_12(%arg0: i32) -> (i32, i32) {
    %c0_i32 = arith.constant 0 : i32
    %c0_i32_0 = arith.constant 0 : i32
    %c0_i32_1 = arith.constant 0 : i32
    return %c0_i32, %c0_i32_0 : i32, i32
  }
  func.func @transform_13(%arg0: i32) -> (i32, i32) {
    %c0_i32 = arith.constant 0 : i32
    %c0_i32_0 = arith.constant 0 : i32
    return %arg0, %c0_i32 : i32, i32
  }
}

</mosaic_0001>

<llo_original>
// kernel: tpu_custom_call.1
$region0: #{tpu_custom_call.1}
  #allocation0 [shape = 'u32[]', space=smem, size = 0x4, offset = 0x4, fixed_abs, tag = 'smem constant byte address 0x4 - core index']
  #allocation1 [shape = 'u32[144,128]{1,0:T(1,128)}', space=vmem, size = 0x12000, scoped, tag = 'internal scratch']
  %s0 = inlined_call_operand.vmem [shape: f32[384,3], index: 0, kind: input, shape index: {}]
  %s1 = inlined_call_operand.vmem [shape: f32[384,8], index: 1, kind: input, shape index: {}]
  %s2 = inlined_call_operand.vmem [shape: f32[3,64], index: 2, kind: input, shape index: {}]
  %s3 = inlined_call_operand.vmem [shape: f32[8,64], index: 3, kind: input, shape index: {}]
  %s4 = inlined_call_operand.vmem [shape: f32[1,64], index: 4, kind: input, shape index: {}]
  %s5 = inlined_call_operand.vmem [shape: f32[64,53], index: 5, kind: input, shape index: {}]
  %s6 = inlined_call_operand.vmem [shape: f32[1,53], index: 6, kind: input, shape index: {}]
  %s7 = inlined_call_operand.vmem [shape: f32[53,64], index: 7, kind: input, shape index: {}]
  %s8 = inlined_call_operand.vmem [shape: f32[3,64], index: 8, kind: input, shape index: {}]
  %s9 = inlined_call_operand.vmem [shape: f32[8,64], index: 9, kind: input, shape index: {}]
  %s10 = inlined_call_operand.vmem [shape: f32[1,64], index: 10, kind: input, shape index: {}]
  %s11 = inlined_call_operand.vmem [shape: f32[64,16], index: 11, kind: input, shape index: {}]
  %s12 = inlined_call_operand.vmem [shape: f32[1,16], index: 12, kind: input, shape index: {}]
  %s13 = inlined_call_operand.vmem [shape: f32[384,16], index: 13, kind: output, shape index: {}]
  %s14 = sld [smem:[#allocation0]]
  $region85: #{tpu_custom_call.1} parent=0
    _
  %s16 = ssub.s32 1, %s14
  %s17 = scalar_select 0, %s16, %s14
  loop: start=0, step=1, limit=5
  $region2: #{tpu_custom_call.1} parent=0 // loop_pre_header
    _
  $region3: #{tpu_custom_call.1} parent=0 // loop_header
    %s19 = sphi 0, %s23
    %p20 = scmp.ge.s32.totalorder %s19, 5
    %s29 = sphi 0, %s31
    %s32 = sphi 0, %s29
    %s33 = sphi 0, %s32
    %s49 = sphi 0, %s33
    %s55 = sphi 0, %s57
    %s58 = sphi 0, %s55
    %s59 = sphi 0, %s58
    %s75 = sphi 0, %s59
    %s79 = sphi 0, %s79
    %s81 = sphi 0, %s79
    %s82 = sphi 0, %s81
    %s96 = sphi 0, %s82
    %s100 = sphi 0, %s100
    %s102 = sphi 0, %s100
    %s103 = sphi 0, %s102
    %s117 = sphi 0, %s103
    %s121 = sphi 0, %s121
    %s123 = sphi 0, %s121
    %s124 = sphi 0, %s123
    %s138 = sphi 0, %s124
    %s142 = sphi 0, %s142
    %s144 = sphi 0, %s142
    %s145 = sphi 0, %s144
    %s159 = sphi 0, %s145
    %s163 = sphi 0, %s163
    %s165 = sphi 0, %s163
    %s166 = sphi 0, %s165
    %s180 = sphi 0, %s166
    %s184 = sphi 0, %s184
    %s186 = sphi 0, %s184
    %s187 = sphi 0, %s186
    %s201 = sphi 0, %s187
    %s205 = sphi 0, %s205
    %s207 = sphi 0, %s205
    %s208 = sphi 0, %s207
    %s222 = sphi 0, %s208
    %s226 = sphi 0, %s226
    %s228 = sphi 0, %s226
    %s229 = sphi 0, %s228
    %s243 = sphi 0, %s229
    %s247 = sphi 0, %s247
    %s249 = sphi 0, %s247
    %s250 = sphi 0, %s249
    %s264 = sphi 0, %s250
    %s268 = sphi 0, %s268
    %s270 = sphi 0, %s268
    %s271 = sphi 0, %s270
    %s285 = sphi 0, %s271
    %s289 = sphi 0, %s289
    %s291 = sphi 0, %s289
    %s292 = sphi 0, %s291
    %s306 = sphi 0, %s292
    %s312 = sphi 0, %s314
    %s315 = sphi 0, %s312
    %s316 = sphi 0, %s315
    %s332 = sphi 0, %s316
  $region4: #{tpu_custom_call.1} parent=0 // loop_header_branch
    %22 = sbr.rel (%p20) target = $region8
  $region5: #{tpu_custom_call.1} parent=0 // loop_body
    %s24 = ssub.s32 %s19, 1
    %s25 = ssub.s32 %s19, 2
    %s26 = sadd.s32 %s19, 1
    %s27 = ssub.s32 %s19, %s26
    %p28 = scmp.eq.s32.totalorder %s27, 0
    %s30 = sadd.s32 %s29, 1
    %s31 = scalar_select %p28, %s29, %s30
    %p34 = pneg %p28
    %p35 = scmp.eq.s32.totalorder %s19, 2
    %p36 = por %p34, %p35
    %p37 = scmp.ne.s32.totalorder %s29, %s32
    %p38 = scmp.eq.s32.totalorder %s19, 0
    %p39 = por %p37, %p38
    %p40 = scmp.ne.s32.totalorder %s29, %s32
    %p41 = scmp.eq.s32.totalorder %s24, 2
    %p42 = por %p40, %p41
    %p43 = scmp.ne.s32.totalorder %s32, %s33
    %p44 = scmp.eq.s32.totalorder %s24, 0
    %p45 = por %p43, %p44
    %p46 = scmp.ne.s32.totalorder %s32, %s33
    %p47 = scmp.eq.s32.totalorder %s25, 2
    %p48 = por %p46, %p47
    %p50 = scmp.ne.s32.totalorder %s33, %s49
    %p51 = scmp.eq.s32.totalorder %s25, 0
    %p52 = por %p50, %p51
    %s53 = ssub.s32 %s19, %s26
    %p54 = scmp.eq.s32.totalorder %s53, 0
    %s56 = sadd.s32 %s55, 1
    %s57 = scalar_select %p54, %s55, %s56
    %p60 = pneg %p54
    %p61 = scmp.eq.s32.totalorder %s19, 2
    %p62 = por %p60, %p61
    %p63 = scmp.ne.s32.totalorder %s55, %s58
    %p64 = scmp.eq.s32.totalorder %s19, 0
    %p65 = por %p63, %p64
    %p66 = scmp.ne.s32.totalorder %s55, %s58
    %p67 = scmp.eq.s32.totalorder %s24, 2
    %p68 = por %p66, %p67
    %p69 = scmp.ne.s32.totalorder %s58, %s59
    %p70 = scmp.eq.s32.totalorder %s24, 0
    %p71 = por %p69, %p70
    %p72 = scmp.ne.s32.totalorder %s58, %s59
    %p73 = scmp.eq.s32.totalorder %s25, 2
    %p74 = por %p72, %p73
    %p76 = scmp.ne.s32.totalorder %s59, %s75
    %p77 = scmp.eq.s32.totalorder %s25, 0
    %p78 = por %p76, %p77
    %s80 = sadd.s32 %s79, 1
    %p83 = scmp.eq.s32.totalorder %s19, 2
    %p84 = scmp.ne.s32.totalorder %s79, %s81
    %p85 = scmp.eq.s32.totalorder %s19, 0
    %p86 = por %p84, %p85
    %p87 = scmp.ne.s32.totalorder %s79, %s81
    %p88 = scmp.eq.s32.totalorder %s24, 2
    %p89 = por %p87, %p88
    %p90 = scmp.ne.s32.totalorder %s81, %s82
    %p91 = scmp.eq.s32.totalorder %s24, 0
    %p92 = por %p90, %p91
    %p93 = scmp.ne.s32.totalorder %s81, %s82
    %p94 = scmp.eq.s32.totalorder %s25, 2
    %p95 = por %p93, %p94
    %p97 = scmp.ne.s32.totalorder %s82, %s96
    %p98 = scmp.eq.s32.totalorder %s25, 0
    %p99 = por %p97, %p98
    %s101 = sadd.s32 %s100, 1
    %p104 = scmp.eq.s32.totalorder %s19, 2
    %p105 = scmp.ne.s32.totalorder %s100, %s102
    %p106 = scmp.eq.s32.totalorder %s19, 0
    %p107 = por %p105, %p106
    %p108 = scmp.ne.s32.totalorder %s100, %s102
    %p109 = scmp.eq.s32.totalorder %s24, 2
    %p110 = por %p108, %p109
    %p111 = scmp.ne.s32.totalorder %s102, %s103
    %p112 = scmp.eq.s32.totalorder %s24, 0
    %p113 = por %p111, %p112
    %p114 = scmp.ne.s32.totalorder %s102, %s103
    %p115 = scmp.eq.s32.totalorder %s25, 2
    %p116 = por %p114, %p115
    %p118 = scmp.ne.s32.totalorder %s103, %s117
    %p119 = scmp.eq.s32.totalorder %s25, 0
    %p120 = por %p118, %p119
    %s122 = sadd.s32 %s121, 1
    %p125 = scmp.eq.s32.totalorder %s19, 2
    %p126 = scmp.ne.s32.totalorder %s121, %s123
    %p127 = scmp.eq.s32.totalorder %s19, 0
    %p128 = por %p126, %p127
    %p129 = scmp.ne.s32.totalorder %s121, %s123
    %p130 = scmp.eq.s32.totalorder %s24, 2
    %p131 = por %p129, %p130
    %p132 = scmp.ne.s32.totalorder %s123, %s124
    %p133 = scmp.eq.s32.totalorder %s24, 0
    %p134 = por %p132, %p133
    %p135 = scmp.ne.s32.totalorder %s123, %s124
    %p136 = scmp.eq.s32.totalorder %s25, 2
    %p137 = por %p135, %p136
    %p139 = scmp.ne.s32.totalorder %s124, %s138
    %p140 = scmp.eq.s32.totalorder %s25, 0
    %p141 = por %p139, %p140
    %s143 = sadd.s32 %s142, 1
    %p146 = scmp.eq.s32.totalorder %s19, 2
    %p147 = scmp.ne.s32.totalorder %s142, %s144
    %p148 = scmp.eq.s32.totalorder %s19, 0
    %p149 = por %p147, %p148
    %p150 = scmp.ne.s32.totalorder %s142, %s144
    %p151 = scmp.eq.s32.totalorder %s24, 2
    %p152 = por %p150, %p151
    %p153 = scmp.ne.s32.totalorder %s144, %s145
    %p154 = scmp.eq.s32.totalorder %s24, 0
    %p155 = por %p153, %p154
    %p156 = scmp.ne.s32.totalorder %s144, %s145
    %p157 = scmp.eq.s32.totalorder %s25, 2
    %p158 = por %p156, %p157
    %p160 = scmp.ne.s32.totalorder %s145, %s159
    %p161 = scmp.eq.s32.totalorder %s25, 0
    %p162 = por %p160, %p161
    %s164 = sadd.s32 %s163, 1
    %p167 = scmp.eq.s32.totalorder %s19, 2
    %p168 = scmp.ne.s32.totalorder %s163, %s165
    %p169 = scmp.eq.s32.totalorder %s19, 0
    %p170 = por %p168, %p169
    %p171 = scmp.ne.s32.totalorder %s163, %s165
    %p172 = scmp.eq.s32.totalorder %s24, 2
    %p173 = por %p171, %p172
    %p174 = scmp.ne.s32.totalorder %s165, %s166
    %p175 = scmp.eq.s32.totalorder %s24, 0
    %p176 = por %p174, %p175
    %p177 = scmp.ne.s32.totalorder %s165, %s166
    %p178 = scmp.eq.s32.totalorder %s25, 2
    %p179 = por %p177, %p178
    %p181 = scmp.ne.s32.totalorder %s166, %s180
    %p182 = scmp.eq.s32.totalorder %s25, 0
    %p183 = por %p181, %p182
    %s185 = sadd.s32 %s184, 1
    %p188 = scmp.eq.s32.totalorder %s19, 2
    %p189 = scmp.ne.s32.totalorder %s184, %s186
    %p190 = scmp.eq.s32.totalorder %s19, 0
    %p191 = por %p189, %p190
    %p192 = scmp.ne.s32.totalorder %s184, %s186
    %p193 = scmp.eq.s32.totalorder %s24, 2
    %p194 = por %p192, %p193
    %p195 = scmp.ne.s32.totalorder %s186, %s187
    %p196 = scmp.eq.s32.totalorder %s24, 0
    %p197 = por %p195, %p196
    %p198 = scmp.ne.s32.totalorder %s186, %s187
    %p199 = scmp.eq.s32.totalorder %s25, 2
    %p200 = por %p198, %p199
    %p202 = scmp.ne.s32.totalorder %s187, %s201
    %p203 = scmp.eq.s32.totalorder %s25, 0
    %p204 = por %p202, %p203
    %s206 = sadd.s32 %s205, 1
    %p209 = scmp.eq.s32.totalorder %s19, 2
    %p210 = scmp.ne.s32.totalorder %s205, %s207
    %p211 = scmp.eq.s32.totalorder %s19, 0
    %p212 = por %p210, %p211
    %p213 = scmp.ne.s32.totalorder %s205, %s207
    %p214 = scmp.eq.s32.totalorder %s24, 2
    %p215 = por %p213, %p214
    %p216 = scmp.ne.s32.totalorder %s207, %s208
    %p217 = scmp.eq.s32.totalorder %s24, 0
    %p218 = por %p216, %p217
    %p219 = scmp.ne.s32.totalorder %s207, %s208
    %p220 = scmp.eq.s32.totalorder %s25, 2
    %p221 = por %p219, %p220
    %p223 = scmp.ne.s32.totalorder %s208, %s222
    %p224 = scmp.eq.s32.totalorder %s25, 0
    %p225 = por %p223, %p224
    %s227 = sadd.s32 %s226, 1
    %p230 = scmp.eq.s32.totalorder %s19, 2
    %p231 = scmp.ne.s32.totalorder %s226, %s228
    %p232 = scmp.eq.s32.totalorder %s19, 0
    %p233 = por %p231, %p232
    %p234 = scmp.ne.s32.totalorder %s226, %s228
    %p235 = scmp.eq.s32.totalorder %s24, 2
    %p236 = por %p234, %p235
    %p237 = scmp.ne.s32.totalorder %s228, %s229
    %p238 = scmp.eq.s32.totalorder %s24, 0
    %p239 = por %p237, %p238
    %p240 = scmp.ne.s32.totalorder %s228, %s229
    %p241 = scmp.eq.s32.totalorder %s25, 2
    %p242 = por %p240, %p241
    %p244 = scmp.ne.s32.totalorder %s229, %s243
    %p245 = scmp.eq.s32.totalorder %s25, 0
    %p246 = por %p244, %p245
    %s248 = sadd.s32 %s247, 1
    %p251 = scmp.eq.s32.totalorder %s19, 2
    %p252 = scmp.ne.s32.totalorder %s247, %s249
    %p253 = scmp.eq.s32.totalorder %s19, 0
    %p254 = por %p252, %p253
    %p255 = scmp.ne.s32.totalorder %s247, %s249
    %p256 = scmp.eq.s32.totalorder %s24, 2
    %p257 = por %p255, %p256
    %p258 = scmp.ne.s32.totalorder %s249, %s250
    %p259 = scmp.eq.s32.totalorder %s24, 0
    %p260 = por %p258, %p259
    %p261 = scmp.ne.s32.totalorder %s249, %s250
    %p262 = scmp.eq.s32.totalorder %s25, 2
    %p263 = por %p261, %p262
    %p265 = scmp.ne.s32.totalorder %s250, %s264
    %p266 = scmp.eq.s32.totalorder %s25, 0
    %p267 = por %p265, %p266
    %s269 = sadd.s32 %s268, 1
    %p272 = scmp.eq.s32.totalorder %s19, 2
    %p273 = scmp.ne.s32.totalorder %s268, %s270
    %p274 = scmp.eq.s32.totalorder %s19, 0
    %p275 = por %p273, %p274
    %p276 = scmp.ne.s32.totalorder %s268, %s270
    %p277 = scmp.eq.s32.totalorder %s24, 2
    %p278 = por %p276, %p277
    %p279 = scmp.ne.s32.totalorder %s270, %s271
    %p280 = scmp.eq.s32.totalorder %s24, 0
    %p281 = por %p279, %p280
    %p282 = scmp.ne.s32.totalorder %s270, %s271
    %p283 = scmp.eq.s32.totalorder %s25, 2
    %p284 = por %p282, %p283
    %p286 = scmp.ne.s32.totalorder %s271, %s285
    %p287 = scmp.eq.s32.totalorder %s25, 0
    %p288 = por %p286, %p287
    %s290 = sadd.s32 %s289, 1
    %p293 = scmp.eq.s32.totalorder %s19, 2
    %p294 = scmp.ne.s32.totalorder %s289, %s291
    %p295 = scmp.eq.s32.totalorder %s19, 0
    %p296 = por %p294, %p295
    %p297 = scmp.ne.s32.totalorder %s289, %s291
    %p298 = scmp.eq.s32.totalorder %s24, 2
    %p299 = por %p297, %p298
    %p300 = scmp.ne.s32.totalorder %s291, %s292
    %p301 = scmp.eq.s32.totalorder %s24, 0
    %p302 = por %p300, %p301
    %p303 = scmp.ne.s32.totalorder %s291, %s292
    %p304 = scmp.eq.s32.totalorder %s25, 2
    %p305 = por %p303, %p304
    %p307 = scmp.ne.s32.totalorder %s292, %s306
    %p308 = scmp.eq.s32.totalorder %s25, 0
    %p309 = por %p307, %p308
    %s310 = ssub.s32 %s19, %s26
    %p311 = scmp.eq.s32.totalorder %s310, 0
    %s313 = sadd.s32 %s312, 1
    %s314 = scalar_select %p311, %s312, %s313
    %p317 = pneg %p311
    %p318 = scmp.eq.s32.totalorder %s19, 2
    %p319 = por %p317, %p318
    %p320 = scmp.ne.s32.totalorder %s312, %s315
    %p321 = scmp.eq.s32.totalorder %s19, 0
    %p322 = por %p320, %p321
    %p323 = scmp.ne.s32.totalorder %s312, %s315
    %p324 = scmp.eq.s32.totalorder %s24, 2
    %p325 = por %p323, %p324
    %p326 = scmp.ne.s32.totalorder %s315, %s316
    %p327 = scmp.eq.s32.totalorder %s24, 0
    %p328 = por %p326, %p327
    %p329 = scmp.ne.s32.totalorder %s315, %s316
    %p330 = scmp.eq.s32.totalorder %s25, 2
    %p331 = por %p329, %p330
    %p333 = scmp.ne.s32.totalorder %s316, %s332
    %p334 = scmp.eq.s32.totalorder %s25, 0
    %p335 = por %p333, %p334
    %p336 = scmp.le.s32.totalorder 1, %s19
    %p337 = scmp.lt.s32.totalorder %s19, 4
    %p338 = pnand %p336, %p337
    %p339 = pneg %p338
    // Predicated region
    $region9: #{tpu_custom_call.1} parent=5 // pred_check
      _
    $region10: #{tpu_custom_call.1} parent=5 // pred_check_branch
      %341 = sbr.rel (%p338) target = $region12
    $region11: #{tpu_custom_call.1} parent=5 // pred_region
      %s342 = ssub.s32 %s19, 1
      // Predicated region
      $region13: #{tpu_custom_call.1} parent=11 // pred_check
        %p343 = pneg %p92
      $region14: #{tpu_custom_call.1} parent=11 // pred_check_branch
        %345 = sbr.rel (%p343) target = $region16
      $region15: #{tpu_custom_call.1} parent=11 // pred_region
        _
      $region16: #{tpu_custom_call.1} parent=11 // pred_fallthru
        _
      // Predicated region
      $region17: #{tpu_custom_call.1} parent=11 // pred_check
        %p346 = pneg %p113
      $region18: #{tpu_custom_call.1} parent=11 // pred_check_branch
        %348 = sbr.rel (%p346) target = $region20
      $region19: #{tpu_custom_call.1} parent=11 // pred_region
        _
      $region20: #{tpu_custom_call.1} parent=11 // pred_fallthru
        _
      // Predicated region
      $region21: #{tpu_custom_call.1} parent=11 // pred_check
        %p349 = pneg %p134
      $region22: #{tpu_custom_call.1} parent=11 // pred_check_branch
        %351 = sbr.rel (%p349) target = $region24
      $region23: #{tpu_custom_call.1} parent=11 // pred_region
        _
      $region24: #{tpu_custom_call.1} parent=11 // pred_fallthru
        _
      // Predicated region
      $region25: #{tpu_custom_call.1} parent=11 // pred_check
        %p352 = pneg %p155
      $region26: #{tpu_custom_call.1} parent=11 // pred_check_branch
        %354 = sbr.rel (%p352) target = $region28
      $region27: #{tpu_custom_call.1} parent=11 // pred_region
        _
      $region28: #{tpu_custom_call.1} parent=11 // pred_fallthru
        _
      // Predicated region
      $region29: #{tpu_custom_call.1} parent=11 // pred_check
        %p355 = pneg %p176
      $region30: #{tpu_custom_call.1} parent=11 // pred_check_branch
        %357 = sbr.rel (%p355) target = $region32
      $region31: #{tpu_custom_call.1} parent=11 // pred_region
        _
      $region32: #{tpu_custom_call.1} parent=11 // pred_fallthru
        _
      // Predicated region
      $region33: #{tpu_custom_call.1} parent=11 // pred_check
        %p358 = pneg %p197
      $region34: #{tpu_custom_call.1} parent=11 // pred_check_branch
        %360 = sbr.rel (%p358) target = $region36
      $region35: #{tpu_custom_call.1} parent=11 // pred_region
        _
      $region36: #{tpu_custom_call.1} parent=11 // pred_fallthru
        _
      // Predicated region
      $region37: #{tpu_custom_call.1} parent=11 // pred_check
        %p361 = pneg %p218
      $region38: #{tpu_custom_call.1} parent=11 // pred_check_branch
        %363 = sbr.rel (%p361) target = $region40
      $region39: #{tpu_custom_call.1} parent=11 // pred_region
        _
      $region40: #{tpu_custom_call.1} parent=11 // pred_fallthru
        _
      // Predicated region
      $region41: #{tpu_custom_call.1} parent=11 // pred_check
        %p364 = pneg %p239
      $region42: #{tpu_custom_call.1} parent=11 // pred_check_branch
        %366 = sbr.rel (%p364) target = $region44
      $region43: #{tpu_custom_call.1} parent=11 // pred_region
        _
      $region44: #{tpu_custom_call.1} parent=11 // pred_fallthru
        _
      // Predicated region
      $region45: #{tpu_custom_call.1} parent=11 // pred_check
        %p367 = pneg %p260
      $region46: #{tpu_custom_call.1} parent=11 // pred_check_branch
        %369 = sbr.rel (%p367) target = $region48
      $region47: #{tpu_custom_call.1} parent=11 // pred_region
        _
      $region48: #{tpu_custom_call.1} parent=11 // pred_fallthru
        _
      // Predicated region
      $region49: #{tpu_custom_call.1} parent=11 // pred_check
        %p370 = pneg %p281
      $region50: #{tpu_custom_call.1} parent=11 // pred_check_branch
        %372 = sbr.rel (%p370) target = $region52
      $region51: #{tpu_custom_call.1} parent=11 // pred_region
        _
      $region52: #{tpu_custom_call.1} parent=11 // pred_fallthru
        _
      // Predicated region
      $region53: #{tpu_custom_call.1} parent=11 // pred_check
        %p373 = pneg %p302
      $region54: #{tpu_custom_call.1} parent=11 // pred_check_branch
        %375 = sbr.rel (%p373) target = $region56
      $region55: #{tpu_custom_call.1} parent=11 // pred_region
        _
      $region56: #{tpu_custom_call.1} parent=11 // pred_fallthru
        _
    $region12: #{tpu_custom_call.1} parent=5 // pred_fallthru
      _
    %p376 = scmp.lt.s32.totalorder %s19, 3
    // Predicated region
    $region57: #{tpu_custom_call.1} parent=5 // pred_check
      %p377 = pneg %p376
    $region58: #{tpu_custom_call.1} parent=5 // pred_check_branch
      %379 = sbr.rel (%p377) target = $region60
    $region59: #{tpu_custom_call.1} parent=5 // pred_region
      // Predicated region
      $region61: #{tpu_custom_call.1} parent=59 // pred_check
        %p380 = pneg %p39
      $region62: #{tpu_custom_call.1} parent=59 // pred_check_branch
        %382 = sbr.rel (%p380) target = $region64
      $region63: #{tpu_custom_call.1} parent=59 // pred_region
        %s383 = smul.u32 16, %s19
        %p384 = scmp.lt.s32.totalorder %s383, 47
        %s385 = scalar_select %p384, %s383, 47
        %s386 = smul.addr %s385, 8
        %s387 = scalar_lea.vmem %s0, %s386
        %s388 = smul.u32 16, %s19
      $region64: #{tpu_custom_call.1} parent=59 // pred_fallthru
        _
      // Predicated region
      $region65: #{tpu_custom_call.1} parent=59 // pred_check
        %p389 = pneg %p65
      $region66: #{tpu_custom_call.1} parent=59 // pred_check_branch
        %391 = sbr.rel (%p389) target = $region68
      $region67: #{tpu_custom_call.1} parent=59 // pred_region
        %s392 = smul.u32 16, %s19
        %p393 = scmp.lt.s32.totalorder %s392, 47
        %s394 = scalar_select %p393, %s392, 47
        %s395 = smul.addr %s394, 8
        %s396 = scalar_lea.vmem %s1, %s395
        %s397 = smul.u32 16, %s19
      $region68: #{tpu_custom_call.1} parent=59 // pred_fallthru
        _
    $region60: #{tpu_custom_call.1} parent=5 // pred_fallthru
      _
    %p398 = scmp.le.s32.totalorder 1, %s19
    %p399 = scmp.lt.s32.totalorder %s19, 4
    %p400 = pnand %p398, %p399
    %p401 = pneg %p400
    // Predicated region
    $region69: #{tpu_custom_call.1} parent=5 // pred_check
      _
    $region70: #{tpu_custom_call.1} parent=5 // pred_check_branch
      %403 = sbr.rel (%p400) target = $region72
    $region71: #{tpu_custom_call.1} parent=5 // pred_region
      %s404 = ssub.s32 %s19, 1
      %s405 = smul.u32 16, %s24
      %p406 = scmp.lt.s32.totalorder %s405, 47
      %s407 = scalar_select %p406, %s405, 47
      %s408 = smul.addr %s407, 8
      %s409 = scalar_lea.vmem %s0, %s408
      %p410 = pneg %p45
      %p411 = pneg %p42
      %s412 = smul.u32 16, %s24
      %p413 = scmp.lt.s32.totalorder %s412, 47
      %s414 = scalar_select %p413, %s412, 47
      %s415 = smul.addr %s414, 8
      %s416 = scalar_lea.vmem %s1, %s415
      %p417 = pneg %p71
      %p418 = pneg %p68
      %p419 = pneg %p92
      %p420 = pneg %p89
      %p421 = pneg %p113
      %p422 = pneg %p110
      %p423 = pneg %p134
      %p424 = pneg %p131
      %p425 = pneg %p155
      %p426 = pneg %p152
      %p427 = pneg %p176
      %p428 = pneg %p173
      %p429 = pneg %p197
      %p430 = pneg %p194
      %p431 = pneg %p218
      %p432 = pneg %p215
      %p433 = pneg %p239
      %p434 = pneg %p236
      %p435 = pneg %p260
      %p436 = pneg %p257
      %p437 = pneg %p281
      %p438 = pneg %p278
      %p439 = pneg %p302
      %p440 = pneg %p299
      %p441 = pneg %p328
      %p442 = pneg %p325
      %s443 = smul.u32 16, %s24
      %p444 = scmp.lt.s32.totalorder %s443, 47
      %s445 = scalar_select %p444, %s443, 47
      %s446 = smul.addr %s445, 8
      %s447 = scalar_lea.vmem %s13, %s446
      %s448 = smul.u32 16, %s24
      %p449 = scmp.lt.s32.totalorder %s448, 47
      %s450 = scalar_select %p449, %s448, 47
      %s451 = smul.addr %s450, 8
      %s452 = scalar_lea.vmem %s0, %s451
      %s453 = smul.u32 16, %s24
      %s454 = smul.u32 16, %s24
      %p455 = scmp.lt.s32.totalorder %s454, 47
      %s456 = scalar_select %p455, %s454, 47
      %s457 = smul.addr %s456, 8
      %s458 = scalar_lea.vmem %s1, %s457
      %s459 = smul.u32 16, %s24
      %s460 = smul.u32 16, %s24
      %p461 = scmp.lt.s32.totalorder %s460, 47
      %s462 = scalar_select %p461, %s460, 47
      %s463 = smul.addr %s462, 8
      %s464 = scalar_lea.vmem %s13, %s463
      %s465 = smul.u32 16, %s24
      %v466 = vld [vmem:[%s452] sm:$0xff]
      %v467 = vld [vmem:[%s452 + $0x8] sm:$0xff]
      %v468 = vld [vmem:[%s452 + $0x10] sm:$0xff]
      %v469 = vld [vmem:[%s452 + $0x18] sm:$0xff]
      %v470 = vld [vmem:[%s452 + $0x20] sm:$0xff]
      %v471 = vld [vmem:[%s452 + $0x28] sm:$0xff]
      %v472 = vld [vmem:[%s452 + $0x30] sm:$0xff]
      %v473 = vld [vmem:[%s452 + $0x38] sm:$0xff]
      %v474 = vld [vmem:[%s452 + $0x40] sm:$0xff]
      %v475 = vld [vmem:[%s452 + $0x48] sm:$0xff]
      %v476 = vld [vmem:[%s452 + $0x50] sm:$0xff]
      %v477 = vld [vmem:[%s452 + $0x58] sm:$0xff]
      %v478 = vld [vmem:[%s452 + $0x60] sm:$0xff]
      %v479 = vld [vmem:[%s452 + $0x68] sm:$0xff]
      %v480 = vld [vmem:[%s452 + $0x70] sm:$0xff]
      %v481 = vld [vmem:[%s452 + $0x78] sm:$0xff]
      %v482 = vld [vmem:[%s458] sm:$0xff]
      %v483 = vld [vmem:[%s458 + $0x8] sm:$0xff]
      %v484 = vld [vmem:[%s458 + $0x10] sm:$0xff]
      %v485 = vld [vmem:[%s458 + $0x18] sm:$0xff]
      %v486 = vld [vmem:[%s458 + $0x20] sm:$0xff]
      %v487 = vld [vmem:[%s458 + $0x28] sm:$0xff]
      %v488 = vld [vmem:[%s458 + $0x30] sm:$0xff]
      %v489 = vld [vmem:[%s458 + $0x38] sm:$0xff]
      %v490 = vld [vmem:[%s458 + $0x40] sm:$0xff]
      %v491 = vld [vmem:[%s458 + $0x48] sm:$0xff]
      %v492 = vld [vmem:[%s458 + $0x50] sm:$0xff]
      %v493 = vld [vmem:[%s458 + $0x58] sm:$0xff]
      %v494 = vld [vmem:[%s458 + $0x60] sm:$0xff]
      %v495 = vld [vmem:[%s458 + $0x68] sm:$0xff]
      %v496 = vld [vmem:[%s458 + $0x70] sm:$0xff]
      %v497 = vld [vmem:[%s458 + $0x78] sm:$0xff]
      %v498 = vld [vmem:[%s2] sm:$0x7]
      %v499 = vld [vmem:[%s3] sm:$0xff]
      %vm500 = vcmask 64512
      %v502 = vsel %vm500, %v482, 0
      %v505 = vsel %vm500, %v483, 0
      %v508 = vsel %vm500, %v484, 0
      %v511 = vsel %vm500, %v485, 0
      %v514 = vsel %vm500, %v486, 0
      %v517 = vsel %vm500, %v487, 0
      %v520 = vsel %vm500, %v488, 0
      %v523 = vsel %vm500, %v489, 0
      %v526 = vsel %vm500, %v490, 0
      %v529 = vsel %vm500, %v491, 0
      %v532 = vsel %vm500, %v492, 0
      %v535 = vsel %vm500, %v493, 0
      %v538 = vsel %vm500, %v494, 0
      %v541 = vsel %vm500, %v495, 0
      %v544 = vsel %vm500, %v496, 0
      %v547 = vsel %vm500, %v497, 0
      %549 = vmatprep.subr.mxu0 0.0
      %550 = vmatpush1.msra.mxu0 %v499
      %551 = vmatprep.subr.mxu0 0.0
      %552 = vmatpush1.msra.mxu0 0.0
      %553 = vmatprep.subr.mxu0 0.0
      %554 = vmatpush1.msra.mxu0 0.0
      %555 = vmatprep.subr.mxu0 0.0
      %556 = vmatpush1.msra.mxu0 0.0
      %557 = vmatprep.subr.mxu0 0.0
      %558 = vmatpush1.msra.mxu0 0.0
      %559 = vmatprep.subr.mxu0 0.0
      %560 = vmatpush1.msra.mxu0 0.0
      %561 = vmatprep.subr.mxu0 0.0
      %562 = vmatpush1.msra.mxu0 0.0
      %563 = vmatprep.subr.mxu0 0.0
      %564 = vmatpush1.msra.mxu0 0.0
      %565 = vmatprep.subr.mxu0 0.0
      %566 = vmatpush1.msra.mxu0 0.0
      %567 = vmatprep.subr.mxu0 0.0
      %568 = vmatpush1.msra.mxu0 0.0
      %569 = vmatprep.subr.mxu0 0.0
      %570 = vmatpush1.msra.mxu0 0.0
      %571 = vmatprep.subr.mxu0 0.0
      %572 = vmatpush1.msra.mxu0 0.0
      %573 = vmatprep.subr.mxu0 0.0
      %574 = vmatpush1.msra.mxu0 0.0
      %575 = vmatprep.subr.mxu0 0.0
      %576 = vmatpush1.msra.mxu0 0.0
      %577 = vmatprep.subr.mxu0 0.0
      %578 = vmatpush1.msra.mxu0 0.0
      %579 = vmatprep.subr.mxu0 0.0
      %580 = vmatpush1.msra.mxu0 0.0
      %581 = vmatprep.subr.mxu0 0.0
      %582 = vmatpush1.msra.mxu0 0.0
      %583 = vmatprep.subr.mxu0 0.0
      %584 = vmatpush1.msra.mxu0 0.0
      %585 = vmatprep.subr.mxu0 0.0
      %586 = vmatpush1.msra.mxu0 0.0
      %587 = vmatprep.subr.mxu0 0.0
      %588 = vmatpush1.msra.mxu0 0.0
      %589 = vmatprep.subr.mxu0 0.0
      %590 = vmatpush1.msra.mxu0 0.0
      %591 = vmatprep.subr.mxu0 0.0
      %592 = vmatpush1.msra.mxu0 0.0
      %593 = vmatprep.subr.mxu0 0.0
      %594 = vmatpush1.msra.mxu0 0.0
      %595 = vmatprep.subr.mxu0 0.0
      %596 = vmatpush1.msra.mxu0 0.0
      %597 = vmatprep.subr.mxu0 0.0
      %598 = vmatpush1.msra.mxu0 0.0
      %599 = vmatprep.subr.mxu0 0.0
      %600 = vmatpush1.msra.mxu0 0.0
      %601 = vmatprep.subr.mxu0 0.0
      %602 = vmatpush1.msra.mxu0 0.0
      %603 = vmatprep.subr.mxu0 0.0
      %604 = vmatpush1.msra.mxu0 0.0
      %605 = vmatprep.subr.mxu0 0.0
      %606 = vmatpush1.msra.mxu0 0.0
      %607 = vmatprep.subr.mxu0 0.0
      %608 = vmatpush1.msra.mxu0 0.0
      %609 = vmatprep.subr.mxu0 0.0
      %610 = vmatpush1.msra.mxu0 0.0
      %611 = vmatprep.subr.mxu0 0.0
      %612 = vmatpush1.msra.mxu0 0.0
      %613 = vmatprep.mubr.f32.mxu0 0.0
      %614 = vmatmul.mubr.f32.gmra.mrb[0].mxu0 %v502
      %v615 = vpop.f32.mrb[0].mxu0
      %v616 = vadd.f32 0.0, %v615
      %v617 = vpop.f32.mrb[0].mxu0
      %618 = vmatprep.mubr.f32.mxu0 0.0
      %619 = vmatmul.mubr.f32.gmra.mrb[0].mxu0 %v505
      %v620 = vpop.f32.mrb[0].mxu0
      %v621 = vadd.f32 0.0, %v620
      %v622 = vpop.f32.mrb[0].mxu0
      %623 = vmatprep.mubr.f32.mxu0 0.0
      %624 = vmatmul.mubr.f32.gmra.mrb[0].mxu0 %v508
      %v625 = vpop.f32.mrb[0].mxu0
      %v626 = vadd.f32 0.0, %v625
      %v627 = vpop.f32.mrb[0].mxu0
      %628 = vmatprep.mubr.f32.mxu0 0.0
      %629 = vmatmul.mubr.f32.gmra.mrb[0].mxu0 %v511
      %v630 = vpop.f32.mrb[0].mxu0
      %v631 = vadd.f32 0.0, %v630
      %v632 = vpop.f32.mrb[0].mxu0
      %633 = vmatprep.mubr.f32.mxu0 0.0
      %634 = vmatmul.mubr.f32.gmra.mrb[0].mxu0 %v514
      %v635 = vpop.f32.mrb[0].mxu0
      %v636 = vadd.f32 0.0, %v635
      %v637 = vpop.f32.mrb[0].mxu0
      %638 = vmatprep.mubr.f32.mxu0 0.0
      %639 = vmatmul.mubr.f32.gmra.mrb[0].mxu0 %v517
      %v640 = vpop.f32.mrb[0].mxu0
      %v641 = vadd.f32 0.0, %v640
      %v642 = vpop.f32.mrb[0].mxu0
      %643 = vmatprep.mubr.f32.mxu0 0.0
      %644 = vmatmul.mubr.f32.gmra.mrb[0].mxu0 %v520
      %v645 = vpop.f32.mrb[0].mxu0
      %v646 = vadd.f32 0.0, %v645
      %v647 = vpop.f32.mrb[0].mxu0
      %648 = vmatprep.mubr.f32.mxu0 0.0
      %649 = vmatmul.mubr.f32.gmra.mrb[0].mxu0 %v523
      %v650 = vpop.f32.mrb[0].mxu0
      %v651 = vadd.f32 0.0, %v650
      %v652 = vpop.f32.mrb[0].mxu0
      %653 = vmatprep.mubr.f32.mxu0 0.0
      %654 = vmatmul.mubr.f32.gmra.mrb[0].mxu0 %v526
      %v655 = vpop.f32.mrb[0].mxu0
      %v656 = vadd.f32 0.0, %v655
      %v657 = vpop.f32.mrb[0].mxu0
      %658 = vmatprep.mubr.f32.mxu0 0.0
      %659 = vmatmul.mubr.f32.gmra.mrb[0].mxu0 %v529
      %v660 = vpop.f32.mrb[0].mxu0
      %v661 = vadd.f32 0.0, %v660
      %v662 = vpop.f32.mrb[0].mxu0
      %663 = vmatprep.mubr.f32.mxu0 0.0
      %664 = vmatmul.mubr.f32.gmra.mrb[0].mxu0 %v532
      %v665 = vpop.f32.mrb[0].mxu0
      %v666 = vadd.f32 0.0, %v665
      %v667 = vpop.f32.mrb[0].mxu0
      %668 = vmatprep.mubr.f32.mxu0 0.0
      %669 = vmatmul.mubr.f32.gmra.mrb[0].mxu0 %v535
      %v670 = vpop.f32.mrb[0].mxu0
      %v671 = vadd.f32 0.0, %v670
      %v672 = vpop.f32.mrb[0].mxu0
      %673 = vmatprep.mubr.f32.mxu0 0.0
      %674 = vmatmul.mubr.f32.gmra.mrb[0].mxu0 %v538
      %v675 = vpop.f32.mrb[0].mxu0
      %v676 = vadd.f32 0.0, %v675
      %v677 = vpop.f32.mrb[0].mxu0
      %678 = vmatprep.mubr.f32.mxu0 0.0
      %679 = vmatmul.mubr.f32.gmra.mrb[0].mxu0 %v541
      %v680 = vpop.f32.mrb[0].mxu0
      %v681 = vadd.f32 0.0, %v680
      %v682 = vpop.f32.mrb[0].mxu0
      %683 = vmatprep.mubr.f32.mxu0 0.0
      %684 = vmatmul.mubr.f32.gmra.mrb[0].mxu0 %v544
      %v685 = vpop.f32.mrb[0].mxu0
      %v686 = vadd.f32 0.0, %v685
      %v687 = vpop.f32.mrb[0].mxu0
      %688 = vmatprep.mubr.f32.mxu0 0.0
      %689 = vmatmul.mubr.f32.gmra.mrb[0].mxu0 %v547
      %v690 = vpop.f32.mrb[0].mxu0
      %v691 = vadd.f32 0.0, %v690
      %v692 = vpop.f32.mrb[0].mxu0
      %693 = vdwg.mxu0
      %vm694 = vcmask 23552
      %v696 = vsel %vm694, %v466, 0
      %v699 = vsel %vm694, %v467, 0
      %v702 = vsel %vm694, %v468, 0
      %v705 = vsel %vm694, %v469, 0
      %v708 = vsel %vm694, %v470, 0
      %v711 = vsel %vm694, %v471, 0
      %v714 = vsel %vm694, %v472, 0
      %v717 = vsel %vm694, %v473, 0
      %v720 = vsel %vm694, %v474, 0
      %v723 = vsel %vm694, %v475, 0
      %v726 = vsel %vm694, %v476, 0
      %v729 = vsel %vm694, %v477, 0
      %v732 = vsel %vm694, %v478, 0
      %v735 = vsel %vm694, %v479, 0
      %v738 = vsel %vm694, %v480, 0
      %v741 = vsel %vm694, %v481, 0
      %vm743 = vcmask 1042432
      %v745 = vsel %vm743, %v498, 0
      %747 = vmatprep.subr.mxu0 0.0
      %748 = vmatpush1.msra.mxu0 %v745
      %749 = vmatprep.subr.mxu0 0.0
      %750 = vmatpush1.msra.mxu0 0.0
      %751 = vmatprep.subr.mxu0 0.0
      %752 = vmatpush1.msra.mxu0 0.0
      %753 = vmatprep.subr.mxu0 0.0
      %754 = vmatpush1.msra.mxu0 0.0
      %755 = vmatprep.subr.mxu0 0.0
      %756 = vmatpush1.msra.mxu0 0.0
      %757 = vmatprep.subr.mxu0 0.0
      %758 = vmatpush1.msra.mxu0 0.0
      %759 = vmatprep.subr.mxu0 0.0
      %760 = vmatpush1.msra.mxu0 0.0
      %761 = vmatprep.subr.mxu0 0.0
      %762 = vmatpush1.msra.mxu0 0.0
      %763 = vmatprep.subr.mxu0 0.0
      %764 = vmatpush1.msra.mxu0 0.0
      %765 = vmatprep.subr.mxu0 0.0
      %766 = vmatpush1.msra.mxu0 0.0
      %767 = vmatprep.subr.mxu0 0.0
      %768 = vmatpush1.msra.mxu0 0.0
      %769 = vmatprep.subr.mxu0 0.0
      %770 = vmatpush1.msra.mxu0 0.0
      %771 = vmatprep.subr.mxu0 0.0
      %772 = vmatpush1.msra.mxu0 0.0
      %773 = vmatprep.subr.mxu0 0.0
      %774 = vmatpush1.msra.mxu0 0.0
      %775 = vmatprep.subr.mxu0 0.0
      %776 = vmatpush1.msra.mxu0 0.0
      %777 = vmatprep.subr.mxu0 0.0
      %778 = vmatpush1.msra.mxu0 0.0
      %779 = vmatprep.subr.mxu0 0.0
      %780 = vmatpush1.msra.mxu0 0.0
      %781 = vmatprep.subr.mxu0 0.0
      %782 = vmatpush1.msra.mxu0 0.0
      %783 = vmatprep.subr.mxu0 0.0
      %784 = vmatpush1.msra.mxu0 0.0
      %785 = vmatprep.subr.mxu0 0.0
      %786 = vmatpush1.msra.mxu0 0.0
      %787 = vmatprep.subr.mxu0 0.0
      %788 = vmatpush1.msra.mxu0 0.0
      %789 = vmatprep.subr.mxu0 0.0
      %790 = vmatpush1.msra.mxu0 0.0
      %791 = vmatprep.subr.mxu0 0.0
      %792 = vmatpush1.msra.mxu0 0.0
      %793 = vmatprep.subr.mxu0 0.0
      %794 = vmatpush1.msra.mxu0 0.0
      %795 = vmatprep.subr.mxu0 0.0
      %796 = vmatpush1.msra.mxu0 0.0
      %797 = vmatprep.subr.mxu0 0.0
      %798 = vmatpush1.msra.mxu0 0.0
      %799 = vmatprep.subr.mxu0 0.0
      %800 = vmatpush1.msra.mxu0 0.0
      %801 = vmatprep.subr.mxu0 0.0
      %802 = vmatpush1.msra.mxu0 0.0
      %803 = vmatprep.subr.mxu0 0.0
      %804 = vmatpush1.msra.mxu0 0.0
      %805 = vmatprep.subr.mxu0 0.0
      %806 = vmatpush1.msra.mxu0 0.0
      %807 = vmatprep.subr.mxu0 0.0
      %808 = vmatpush1.msra.mxu0 0.0
      %809 = vmatprep.subr.mxu0 0.0
      %810 = vmatpush1.msra.mxu0 0.0
      %811 = vmatprep.mubr.f32.mxu0 0.0
      %812 = vmatmul.mubr.f32.gmra.mrb[0].mxu0 %v696
      %v813 = vpop.f32.mrb[0].mxu0
      %v814 = vadd.f32 %v616, %v813
      %v815 = vpop.f32.mrb[0].mxu0
      %816 = vmatprep.mubr.f32.mxu0 0.0
      %817 = vmatmul.mubr.f32.gmra.mrb[0].mxu0 %v699
      %v818 = vpop.f32.mrb[0].mxu0
      %v819 = vadd.f32 %v621, %v818
      %v820 = vpop.f32.mrb[0].mxu0
      %821 = vmatprep.mubr.f32.mxu0 0.0
      %822 = vmatmul.mubr.f32.gmra.mrb[0].mxu0 %v702
      %v823 = vpop.f32.mrb[0].mxu0
      %v824 = vadd.f32 %v626, %v823
      %v825 = vpop.f32.mrb[0].mxu0
      %826 = vmatprep.mubr.f32.mxu0 0.0
      %827 = vmatmul.mubr.f32.gmra.mrb[0].mxu0 %v705
      %v828 = vpop.f32.mrb[0].mxu0
      %v829 = vadd.f32 %v631, %v828
      %v830 = vpop.f32.mrb[0].mxu0
      %831 = vmatprep.mubr.f32.mxu0 0.0
      %832 = vmatmul.mubr.f32.gmra.mrb[0].mxu0 %v708
      %v833 = vpop.f32.mrb[0].mxu0
      %v834 = vadd.f32 %v636, %v833
      %v835 = vpop.f32.mrb[0].mxu0
      %836 = vmatprep.mubr.f32.mxu0 0.0
      %837 = vmatmul.mubr.f32.gmra.mrb[0].mxu0 %v711
      %v838 = vpop.f32.mrb[0].mxu0
      %v839 = vadd.f32 %v641, %v838
      %v840 = vpop.f32.mrb[0].mxu0
      %841 = vmatprep.mubr.f32.mxu0 0.0
      %842 = vmatmul.mubr.f32.gmra.mrb[0].mxu0 %v714
      %v843 = vpop.f32.mrb[0].mxu0
      %v844 = vadd.f32 %v646, %v843
      %v845 = vpop.f32.mrb[0].mxu0
      %846 = vmatprep.mubr.f32.mxu0 0.0
      %847 = vmatmul.mubr.f32.gmra.mrb[0].mxu0 %v717
      %v848 = vpop.f32.mrb[0].mxu0
      %v849 = vadd.f32 %v651, %v848
      %v850 = vpop.f32.mrb[0].mxu0
      %851 = vmatprep.mubr.f32.mxu0 0.0
      %852 = vmatmul.mubr.f32.gmra.mrb[0].mxu0 %v720
      %v853 = vpop.f32.mrb[0].mxu0
      %v854 = vadd.f32 %v656, %v853
      %v855 = vpop.f32.mrb[0].mxu0
      %856 = vmatprep.mubr.f32.mxu0 0.0
      %857 = vmatmul.mubr.f32.gmra.mrb[0].mxu0 %v723
      %v858 = vpop.f32.mrb[0].mxu0
      %v859 = vadd.f32 %v661, %v858
      %v860 = vpop.f32.mrb[0].mxu0
      %861 = vmatprep.mubr.f32.mxu0 0.0
      %862 = vmatmul.mubr.f32.gmra.mrb[0].mxu0 %v726
      %v863 = vpop.f32.mrb[0].mxu0
      %v864 = vadd.f32 %v666, %v863
      %v865 = vpop.f32.mrb[0].mxu0
      %866 = vmatprep.mubr.f32.mxu0 0.0
      %867 = vmatmul.mubr.f32.gmra.mrb[0].mxu0 %v729
      %v868 = vpop.f32.mrb[0].mxu0
      %v869 = vadd.f32 %v671, %v868
      %v870 = vpop.f32.mrb[0].mxu0
      %871 = vmatprep.mubr.f32.mxu0 0.0
      %872 = vmatmul.mubr.f32.gmra.mrb[0].mxu0 %v732
      %v873 = vpop.f32.mrb[0].mxu0
      %v874 = vadd.f32 %v676, %v873
      %v875 = vpop.f32.mrb[0].mxu0
      %876 = vmatprep.mubr.f32.mxu0 0.0
      %877 = vmatmul.mubr.f32.gmra.mrb[0].mxu0 %v735
      %v878 = vpop.f32.mrb[0].mxu0
      %v879 = vadd.f32 %v681, %v878
      %v880 = vpop.f32.mrb[0].mxu0
      %881 = vmatprep.mubr.f32.mxu0 0.0
      %882 = vmatmul.mubr.f32.gmra.mrb[0].mxu0 %v738
      %v883 = vpop.f32.mrb[0].mxu0
      %v884 = vadd.f32 %v686, %v883
      %v885 = vpop.f32.mrb[0].mxu0
      %886 = vmatprep.mubr.f32.mxu0 0.0
      %887 = vmatmul.mubr.f32.gmra.mrb[0].mxu0 %v741
      %v888 = vpop.f32.mrb[0].mxu0
      %v889 = vadd.f32 %v691, %v888
      %v890 = vpop.f32.mrb[0].mxu0
      %891 = vdwg.mxu0
      %v892 = vld [vmem:[%s4] sm:$0x1]
      %v894 = vlaneseq
      %v895 = vshrl.u32 %v894, 7
      %v896 = vsub.s32 0, %v895
      %v897 = vrot.slane %v892, %v896
      %v899 = vadd.f32 %v814, %v897
      %v900 = vadd.f32 %v819, %v897
      %v901 = vadd.f32 %v824, %v897
      %v902 = vadd.f32 %v829, %v897
      %v903 = vadd.f32 %v834, %v897
      %v904 = vadd.f32 %v839, %v897
      %v905 = vadd.f32 %v844, %v897
      %v906 = vadd.f32 %v849, %v897
      %v907 = vadd.f32 %v854, %v897
      %v908 = vadd.f32 %v859, %v897
      %v909 = vadd.f32 %v864, %v897
      %v910 = vadd.f32 %v869, %v897
      %v911 = vadd.f32 %v874, %v897
      %v912 = vadd.f32 %v879, %v897
      %v913 = vadd.f32 %v884, %v897
      %v914 = vadd.f32 %v889, %v897
      %v915 = vmul.f32 %v899, 100.0
      %v916 = vmul.f32 %v900, 100.0
      %v917 = vmul.f32 %v901, 100.0
      %v918 = vmul.f32 %v902, 100.0
      %v919 = vmul.f32 %v903, 100.0
      %v920 = vmul.f32 %v904, 100.0
      %v921 = vmul.f32 %v905, 100.0
      %v922 = vmul.f32 %v906, 100.0
      %v923 = vmul.f32 %v907, 100.0
      %v924 = vmul.f32 %v908, 100.0
      %v925 = vmul.f32 %v909, 100.0
      %v926 = vmul.f32 %v910, 100.0
      %v927 = vmul.f32 %v911, 100.0
      %v928 = vmul.f32 %v912, 100.0
      %v929 = vmul.f32 %v913, 100.0
      %v930 = vmul.f32 %v914, 100.0
      %v931 = vmin.f32 %v915, 20.0
      %v932 = vmin.f32 %v916, 20.0
      %v933 = vmin.f32 %v917, 20.0
      %v934 = vmin.f32 %v918, 20.0
      %v935 = vmin.f32 %v919, 20.0
      %v936 = vmin.f32 %v920, 20.0
      %v937 = vmin.f32 %v921, 20.0
      %v938 = vmin.f32 %v922, 20.0
      %v939 = vmin.f32 %v923, 20.0
      %v940 = vmin.f32 %v924, 20.0
      %v941 = vmin.f32 %v925, 20.0
      %v942 = vmin.f32 %v926, 20.0
      %v943 = vmin.f32 %v927, 20.0
      %v944 = vmin.f32 %v928, 20.0
      %v945 = vmin.f32 %v929, 20.0
      %v946 = vmin.f32 %v930, 20.0
      %vm947 = vcmp.gt.f32.partialorder %v915, 20.0
      %vm948 = vcmp.gt.f32.partialorder %v916, 20.0
      %vm949 = vcmp.gt.f32.partialorder %v917, 20.0
      %vm950 = vcmp.gt.f32.partialorder %v918, 20.0
      %vm951 = vcmp.gt.f32.partialorder %v919, 20.0
      %vm952 = vcmp.gt.f32.partialorder %v920, 20.0
      %vm953 = vcmp.gt.f32.partialorder %v921, 20.0
      %vm954 = vcmp.gt.f32.partialorder %v922, 20.0
      %vm955 = vcmp.gt.f32.partialorder %v923, 20.0
      %vm956 = vcmp.gt.f32.partialorder %v924, 20.0
      %vm957 = vcmp.gt.f32.partialorder %v925, 20.0
      %vm958 = vcmp.gt.f32.partialorder %v926, 20.0
      %vm959 = vcmp.gt.f32.partialorder %v927, 20.0
      %vm960 = vcmp.gt.f32.partialorder %v928, 20.0
      %vm961 = vcmp.gt.f32.partialorder %v929, 20.0
      %vm962 = vcmp.gt.f32.partialorder %v930, 20.0
      %v963 = vmul.f32 %v931, 1.442695
      %v964 = vpow.pop %v963
      %v965 = vmul.f32 %v932, 1.442695
      %v966 = vpow.pop %v965
      %v967 = vmul.f32 %v933, 1.442695
      %v968 = vpow.pop %v967
      %v969 = vmul.f32 %v934, 1.442695
      %v970 = vpow.pop %v969
      %v971 = vmul.f32 %v935, 1.442695
      %v972 = vpow.pop %v971
      %v973 = vmul.f32 %v936, 1.442695
      %v974 = vpow.pop %v973
      %v975 = vmul.f32 %v937, 1.442695
      %v976 = vpow.pop %v975
      %v977 = vmul.f32 %v938, 1.442695
      %v978 = vpow.pop %v977
      %v979 = vmul.f32 %v939, 1.442695
      %v980 = vpow.pop %v979
      %v981 = vmul.f32 %v940, 1.442695
      %v982 = vpow.pop %v981
      %v983 = vmul.f32 %v941, 1.442695
      %v984 = vpow.pop %v983
      %v985 = vmul.f32 %v942, 1.442695
      %v986 = vpow.pop %v985
      %v987 = vmul.f32 %v943, 1.442695
      %v988 = vpow.pop %v987
      %v989 = vmul.f32 %v944, 1.442695
      %v990 = vpow.pop %v989
      %v991 = vmul.f32 %v945, 1.442695
      %v992 = vpow.pop %v991
      %v993 = vmul.f32 %v946, 1.442695
      %v994 = vpow.pop %v993
      %v995 = vadd.f32 %v964, 1.0
      %v996 = vlog2.pop %v995
      %v997 = vmul.f32 %v996, 0.6931472
      %v998 = vmul.f32 -0.5, %v964
      %v999 = vadd.f32 %v998, 1.0
      %v1000 = vmul.f32 %v999, %v964
      %v1001 = vand.u32 2147483647, %v964
      %vm1002 = vcmp.lt.f32.partialorder %v1001, 0.0004427343
      %v1003 = vsel %vm1002, %v1000, %v997
      %v1004 = vadd.f32 %v966, 1.0
      %v1005 = vlog2.pop %v1004
      %v1006 = vmul.f32 %v1005, 0.6931472
      %v1007 = vmul.f32 -0.5, %v966
      %v1008 = vadd.f32 %v1007, 1.0
      %v1009 = vmul.f32 %v1008, %v966
      %v1010 = vand.u32 2147483647, %v966
      %vm1011 = vcmp.lt.f32.partialorder %v1010, 0.0004427343
      %v1012 = vsel %vm1011, %v1009, %v1006
      %v1013 = vadd.f32 %v968, 1.0
      %v1014 = vlog2.pop %v1013
      %v1015 = vmul.f32 %v1014, 0.6931472
      %v1016 = vmul.f32 -0.5, %v968
      %v1017 = vadd.f32 %v1016, 1.0
      %v1018 = vmul.f32 %v1017, %v968
      %v1019 = vand.u32 2147483647, %v968
      %vm1020 = vcmp.lt.f32.partialorder %v1019, 0.0004427343
      %v1021 = vsel %vm1020, %v1018, %v1015
      %v1022 = vadd.f32 %v970, 1.0
      %v1023 = vlog2.pop %v1022
      %v1024 = vmul.f32 %v1023, 0.6931472
      %v1025 = vmul.f32 -0.5, %v970
      %v1026 = vadd.f32 %v1025, 1.0
      %v1027 = vmul.f32 %v1026, %v970
      %v1028 = vand.u32 2147483647, %v970
      %vm1029 = vcmp.lt.f32.partialorder %v1028, 0.0004427343
      %v1030 = vsel %vm1029, %v1027, %v1024
      %v1031 = vadd.f32 %v972, 1.0
      %v1032 = vlog2.pop %v1031
      %v1033 = vmul.f32 %v1032, 0.6931472
      %v1034 = vmul.f32 -0.5, %v972
      %v1035 = vadd.f32 %v1034, 1.0
      %v1036 = vmul.f32 %v1035, %v972
      %v1037 = vand.u32 2147483647, %v972
      %vm1038 = vcmp.lt.f32.partialorder %v1037, 0.0004427343
      %v1039 = vsel %vm1038, %v1036, %v1033
      %v1040 = vadd.f32 %v974, 1.0
      %v1041 = vlog2.pop %v1040
      %v1042 = vmul.f32 %v1041, 0.6931472
      %v1043 = vmul.f32 -0.5, %v974
      %v1044 = vadd.f32 %v1043, 1.0
      %v1045 = vmul.f32 %v1044, %v974
      %v1046 = vand.u32 2147483647, %v974
      %vm1047 = vcmp.lt.f32.partialorder %v1046, 0.0004427343
      %v1048 = vsel %vm1047, %v1045, %v1042
      %v1049 = vadd.f32 %v976, 1.0
      %v1050 = vlog2.pop %v1049
      %v1051 = vmul.f32 %v1050, 0.6931472
      %v1052 = vmul.f32 -0.5, %v976
      %v1053 = vadd.f32 %v1052, 1.0
      %v1054 = vmul.f32 %v1053, %v976
      %v1055 = vand.u32 2147483647, %v976
      %vm1056 = vcmp.lt.f32.partialorder %v1055, 0.0004427343
      %v1057 = vsel %vm1056, %v1054, %v1051
      %v1058 = vadd.f32 %v978, 1.0
      %v1059 = vlog2.pop %v1058
      %v1060 = vmul.f32 %v1059, 0.6931472
      %v1061 = vmul.f32 -0.5, %v978
      %v1062 = vadd.f32 %v1061, 1.0
      %v1063 = vmul.f32 %v1062, %v978
      %v1064 = vand.u32 2147483647, %v978
      %vm1065 = vcmp.lt.f32.partialorder %v1064, 0.0004427343
      %v1066 = vsel %vm1065, %v1063, %v1060
      %v1067 = vadd.f32 %v980, 1.0
      %v1068 = vlog2.pop %v1067
      %v1069 = vmul.f32 %v1068, 0.6931472
      %v1070 = vmul.f32 -0.5, %v980
      %v1071 = vadd.f32 %v1070, 1.0
      %v1072 = vmul.f32 %v1071, %v980
      %v1073 = vand.u32 2147483647, %v980
      %vm1074 = vcmp.lt.f32.partialorder %v1073, 0.0004427343
      %v1075 = vsel %vm1074, %v1072, %v1069
      %v1076 = vadd.f32 %v982, 1.0
      %v1077 = vlog2.pop %v1076
      %v1078 = vmul.f32 %v1077, 0.6931472
      %v1079 = vmul.f32 -0.5, %v982
      %v1080 = vadd.f32 %v1079, 1.0
      %v1081 = vmul.f32 %v1080, %v982
      %v1082 = vand.u32 2147483647, %v982
      %vm1083 = vcmp.lt.f32.partialorder %v1082, 0.0004427343
      %v1084 = vsel %vm1083, %v1081, %v1078
      %v1085 = vadd.f32 %v984, 1.0
      %v1086 = vlog2.pop %v1085
      %v1087 = vmul.f32 %v1086, 0.6931472
      %v1088 = vmul.f32 -0.5, %v984
      %v1089 = vadd.f32 %v1088, 1.0
      %v1090 = vmul.f32 %v1089, %v984
      %v1091 = vand.u32 2147483647, %v984
      %vm1092 = vcmp.lt.f32.partialorder %v1091, 0.0004427343
      %v1093 = vsel %vm1092, %v1090, %v1087
      %v1094 = vadd.f32 %v986, 1.0
      %v1095 = vlog2.pop %v1094
      %v1096 = vmul.f32 %v1095, 0.6931472
      %v1097 = vmul.f32 -0.5, %v986
      %v1098 = vadd.f32 %v1097, 1.0
      %v1099 = vmul.f32 %v1098, %v986
      %v1100 = vand.u32 2147483647, %v986
      %vm1101 = vcmp.lt.f32.partialorder %v1100, 0.0004427343
      %v1102 = vsel %vm1101, %v1099, %v1096
      %v1103 = vadd.f32 %v988, 1.0
      %v1104 = vlog2.pop %v1103
      %v1105 = vmul.f32 %v1104, 0.6931472
      %v1106 = vmul.f32 -0.5, %v988
      %v1107 = vadd.f32 %v1106, 1.0
      %v1108 = vmul.f32 %v1107, %v988
      %v1109 = vand.u32 2147483647, %v988
      %vm1110 = vcmp.lt.f32.partialorder %v1109, 0.0004427343
      %v1111 = vsel %vm1110, %v1108, %v1105
      %v1112 = vadd.f32 %v990, 1.0
      %v1113 = vlog2.pop %v1112
      %v1114 = vmul.f32 %v1113, 0.6931472
      %v1115 = vmul.f32 -0.5, %v990
      %v1116 = vadd.f32 %v1115, 1.0
      %v1117 = vmul.f32 %v1116, %v990
      %v1118 = vand.u32 2147483647, %v990
      %vm1119 = vcmp.lt.f32.partialorder %v1118, 0.0004427343
      %v1120 = vsel %vm1119, %v1117, %v1114
      %v1121 = vadd.f32 %v992, 1.0
      %v1122 = vlog2.pop %v1121
      %v1123 = vmul.f32 %v1122, 0.6931472
      %v1124 = vmul.f32 -0.5, %v992
      %v1125 = vadd.f32 %v1124, 1.0
      %v1126 = vmul.f32 %v1125, %v992
      %v1127 = vand.u32 2147483647, %v992
      %vm1128 = vcmp.lt.f32.partialorder %v1127, 0.0004427343
      %v1129 = vsel %vm1128, %v1126, %v1123
      %v1130 = vadd.f32 %v994, 1.0
      %v1131 = vlog2.pop %v1130
      %v1132 = vmul.f32 %v1131, 0.6931472
      %v1133 = vmul.f32 -0.5, %v994
      %v1134 = vadd.f32 %v1133, 1.0
      %v1135 = vmul.f32 %v1134, %v994
      %v1136 = vand.u32 2147483647, %v994
      %vm1137 = vcmp.lt.f32.partialorder %v1136, 0.0004427343
      %v1138 = vsel %vm1137, %v1135, %v1132
      %v1139 = vrcp.pop 100.0
      %v1140 = vmul.f32 %v1003, %v1139
      %v1141 = vmul.f32 %v1012, %v1139
      %v1142 = vmul.f32 %v1021, %v1139
      %v1143 = vmul.f32 %v1030, %v1139
      %v1144 = vmul.f32 %v1039, %v1139
      %v1145 = vmul.f32 %v1048, %v1139
      %v1146 = vmul.f32 %v1057, %v1139
      %v1147 = vmul.f32 %v1066, %v1139
      %v1148 = vmul.f32 %v1075, %v1139
      %v1149 = vmul.f32 %v1084, %v1139
      %v1150 = vmul.f32 %v1093, %v1139
      %v1151 = vmul.f32 %v1102, %v1139
      %v1152 = vmul.f32 %v1111, %v1139
      %v1153 = vmul.f32 %v1120, %v1139
      %v1154 = vmul.f32 %v1129, %v1139
      %v1155 = vmul.f32 %v1138, %v1139
      %v1156 = vsel %vm947, %v899, %v1140
      %v1157 = vsel %vm948, %v900, %v1141
      %v1158 = vsel %vm949, %v901, %v1142
      %v1159 = vsel %vm950, %v902, %v1143
      %v1160 = vsel %vm951, %v903, %v1144
      %v1161 = vsel %vm952, %v904, %v1145
      %v1162 = vsel %vm953, %v905, %v1146
      %v1163 = vsel %vm954, %v906, %v1147
      %v1164 = vsel %vm955, %v907, %v1148
      %v1165 = vsel %vm956, %v908, %v1149
      %v1166 = vsel %vm957, %v909, %v1150
      %v1167 = vsel %vm958, %v910, %v1151
      %v1168 = vsel %vm959, %v911, %v1152
      %v1169 = vsel %vm960, %v912, %v1153
      %v1170 = vsel %vm961, %v913, %v1154
      %v1171 = vsel %vm962, %v914, %v1155
      %v1172 = vld [vmem:[%s5] sm:$0xff]
      %v1173 = vld [vmem:[%s5 + $0x8] sm:$0xff]
      %v1174 = vld [vmem:[%s5 + $0x10] sm:$0xff]
      %v1175 = vld [vmem:[%s5 + $0x18] sm:$0xff]
      %v1176 = vld [vmem:[%s5 + $0x20] sm:$0xff]
      %v1177 = vld [vmem:[%s5 + $0x28] sm:$0xff]
      %v1178 = vld [vmem:[%s5 + $0x30] sm:$0xff]
      %v1179 = vld [vmem:[%s5 + $0x38] sm:$0xff]
      %v1180 = vld [vmem:[%s6] sm:$0x1]
      %v1182 = vlaneseq
      %v1183 = vshrl.u32 %v1182, 7
      %v1184 = vsub.s32 0, %v1183
      %v1185 = vrot.slane %v1180, %v1184
      %vm1187 = vcmask 523264
      %v1189 = vsel %vm1187, %v1156, 0
      %v1192 = vsel %vm1187, %v1157, 0
      %v1195 = vsel %vm1187, %v1158, 0
      %v1198 = vsel %vm1187, %v1159, 0
      %v1201 = vsel %vm1187, %v1160, 0
      %v1204 = vsel %vm1187, %v1161, 0
      %v1207 = vsel %vm1187, %v1162, 0
      %v1210 = vsel %vm1187, %v1163, 0
      %v1213 = vsel %vm1187, %v1164, 0
      %v1216 = vsel %vm1187, %v1165, 0
      %v1219 = vsel %vm1187, %v1166, 0
      %v1222 = vsel %vm1187, %v1167, 0
      %v1225 = vsel %vm1187, %v1168, 0
      %v1228 = vsel %vm1187, %v1169, 0
      %v1231 = vsel %vm1187, %v1170, 0
      %v1234 = vsel %vm1187, %v1171, 0
      %1236 = vmatprep.subr.mxu0 0.0
      %1237 = vmatpush1.msra.mxu0 %v1172
      %1238 = vmatprep.subr.mxu0 0.0
      %1239 = vmatpush1.msra.mxu0 %v1173
      %1240 = vmatprep.subr.mxu0 0.0
      %1241 = vmatpush1.msra.mxu0 %v1174
      %1242 = vmatprep.subr.mxu0 0.0
      %1243 = vmatpush1.msra.mxu0 %v1175
      %1244 = vmatprep.subr.mxu0 0.0
      %1245 = vmatpush1.msra.mxu0 %v1176
      %1246 = vmatprep.subr.mxu0 0.0
      %1247 = vmatpush1.msra.mxu0 %v1177
      %1248 = vmatprep.subr.mxu0 0.0
      %1249 = vmatpush1.msra.mxu0 %v1178
      %1250 = vmatprep.subr.mxu0 0.0
      %1251 = vmatpush1.msra.mxu0 %v1179
      %1252 = vmatprep.subr.mxu0 0.0
      %1253 = vmatpush1.msra.mxu0 0.0
      %1254 = vmatprep.subr.mxu0 0.0
      %1255 = vmatpush1.msra.mxu0 0.0
      %1256 = vmatprep.subr.mxu0 0.0
      %1257 = vmatpush1.msra.mxu0 0.0
      %1258 = vmatprep.subr.mxu0 0.0
      %1259 = vmatpush1.msra.mxu0 0.0
      %1260 = vmatprep.subr.mxu0 0.0
      %1261 = vmatpush1.msra.mxu0 0.0
      %1262 = vmatprep.subr.mxu0 0.0
      %1263 = vmatpush1.msra.mxu0 0.0
      %1264 = vmatprep.subr.mxu0 0.0
      %1265 = vmatpush1.msra.mxu0 0.0
      %1266 = vmatprep.subr.mxu0 0.0
      %1267 = vmatpush1.msra.mxu0 0.0
      %1268 = vmatprep.subr.mxu0 0.0
      %1269 = vmatpush1.msra.mxu0 0.0
      %1270 = vmatprep.subr.mxu0 0.0
      %1271 = vmatpush1.msra.mxu0 0.0
      %1272 = vmatprep.subr.mxu0 0.0
      %1273 = vmatpush1.msra.mxu0 0.0
      %1274 = vmatprep.subr.mxu0 0.0
      %1275 = vmatpush1.msra.mxu0 0.0
      %1276 = vmatprep.subr.mxu0 0.0
      %1277 = vmatpush1.msra.mxu0 0.0
      %1278 = vmatprep.subr.mxu0 0.0
      %1279 = vmatpush1.msra.mxu0 0.0
      %1280 = vmatprep.subr.mxu0 0.0
      %1281 = vmatpush1.msra.mxu0 0.0
      %1282 = vmatprep.subr.mxu0 0.0
      %1283 = vmatpush1.msra.mxu0 0.0
      %1284 = vmatprep.subr.mxu0 0.0
      %1285 = vmatpush1.msra.mxu0 0.0
      %1286 = vmatprep.subr.mxu0 0.0
      %1287 = vmatpush1.msra.mxu0 0.0
      %1288 = vmatprep.subr.mxu0 0.0
      %1289 = vmatpush1.msra.mxu0 0.0
      %1290 = vmatprep.subr.mxu0 0.0
      %1291 = vmatpush1.msra.mxu0 0.0
      %1292 = vmatprep.subr.mxu0 0.0
      %1293 = vmatpush1.msra.mxu0 0.0
      %1294 = vmatprep.subr.mxu0 0.0
      %1295 = vmatpush1.msra.mxu0 0.0
      %1296 = vmatprep.subr.mxu0 0.0
      %1297 = vmatpush1.msra.mxu0 0.0
      %1298 = vmatprep.subr.mxu0 0.0
      %1299 = vmatpush1.msra.mxu0 0.0
      %1300 = vmatprep.mubr.f32.mxu0 0.0
      %1301 = vmatmul.mubr.f32.gmra.mrb[0].mxu0 %v1189
      %v1302 = vpop.f32.mrb[0].mxu0
      %v1303 = vadd.f32 %v1185, %v1302
      %v1304 = vpop.f32.mrb[0].mxu0
      %1305 = vmatprep.mubr.f32.mxu0 0.0
      %1306 = vmatmul.mubr.f32.gmra.mrb[0].mxu0 %v1192
      %v1307 = vpop.f32.mrb[0].mxu0
      %v1308 = vadd.f32 %v1185, %v1307
      %v1309 = vpop.f32.mrb[0].mxu0
      %1310 = vmatprep.mubr.f32.mxu0 0.0
      %1311 = vmatmul.mubr.f32.gmra.mrb[0].mxu0 %v1195
      %v1312 = vpop.f32.mrb[0].mxu0
      %v1313 = vadd.f32 %v1185, %v1312
      %v1314 = vpop.f32.mrb[0].mxu0
      %1315 = vmatprep.mubr.f32.mxu0 0.0
      %1316 = vmatmul.mubr.f32.gmra.mrb[0].mxu0 %v1198
      %v1317 = vpop.f32.mrb[0].mxu0
      %v1318 = vadd.f32 %v1185, %v1317
      %v1319 = vpop.f32.mrb[0].mxu0
      %1320 = vmatprep.mubr.f32.mxu0 0.0
      %1321 = vmatmul.mubr.f32.gmra.mrb[0].mxu0 %v1201
      %v1322 = vpop.f32.mrb[0].mxu0
      %v1323 = vadd.f32 %v1185, %v1322
      %v1324 = vpop.f32.mrb[0].mxu0
      %1325 = vmatprep.mubr.f32.mxu0 0.0
      %1326 = vmatmul.mubr.f32.gmra.mrb[0].mxu0 %v1204
      %v1327 = vpop.f32.mrb[0].mxu0
      %v1328 = vadd.f32 %v1185, %v1327
      %v1329 = vpop.f32.mrb[0].mxu0
      %1330 = vmatprep.mubr.f32.mxu0 0.0
      %1331 = vmatmul.mubr.f32.gmra.mrb[0].mxu0 %v1207
      %v1332 = vpop.f32.mrb[0].mxu0
      %v1333 = vadd.f32 %v1185, %v1332
      %v1334 = vpop.f32.mrb[0].mxu0
      %1335 = vmatprep.mubr.f32.mxu0 0.0
      %1336 = vmatmul.mubr.f32.gmra.mrb[0].mxu0 %v1210
      %v1337 = vpop.f32.mrb[0].mxu0
      %v1338 = vadd.f32 %v1185, %v1337
      %v1339 = vpop.f32.mrb[0].mxu0
      %1340 = vmatprep.mubr.f32.mxu0 0.0
      %1341 = vmatmul.mubr.f32.gmra.mrb[0].mxu0 %v1213
      %v1342 = vpop.f32.mrb[0].mxu0
      %v1343 = vadd.f32 %v1185, %v1342
      %v1344 = vpop.f32.mrb[0].mxu0
      %1345 = vmatprep.mubr.f32.mxu0 0.0
      %1346 = vmatmul.mubr.f32.gmra.mrb[0].mxu0 %v1216
      %v1347 = vpop.f32.mrb[0].mxu0
      %v1348 = vadd.f32 %v1185, %v1347
      %v1349 = vpop.f32.mrb[0].mxu0
      %1350 = vmatprep.mubr.f32.mxu0 0.0
      %1351 = vmatmul.mubr.f32.gmra.mrb[0].mxu0 %v1219
      %v1352 = vpop.f32.mrb[0].mxu0
      %v1353 = vadd.f32 %v1185, %v1352
      %v1354 = vpop.f32.mrb[0].mxu0
      %1355 = vmatprep.mubr.f32.mxu0 0.0
      %1356 = vmatmul.mubr.f32.gmra.mrb[0].mxu0 %v1222
      %v1357 = vpop.f32.mrb[0].mxu0
      %v1358 = vadd.f32 %v1185, %v1357
      %v1359 = vpop.f32.mrb[0].mxu0
      %1360 = vmatprep.mubr.f32.mxu0 0.0
      %1361 = vmatmul.mubr.f32.gmra.mrb[0].mxu0 %v1225
      %v1362 = vpop.f32.mrb[0].mxu0
      %v1363 = vadd.f32 %v1185, %v1362
      %v1364 = vpop.f32.mrb[0].mxu0
      %1365 = vmatprep.mubr.f32.mxu0 0.0
      %1366 = vmatmul.mubr.f32.gmra.mrb[0].mxu0 %v1228
      %v1367 = vpop.f32.mrb[0].mxu0
      %v1368 = vadd.f32 %v1185, %v1367
      %v1369 = vpop.f32.mrb[0].mxu0
      %1370 = vmatprep.mubr.f32.mxu0 0.0
      %1371 = vmatmul.mubr.f32.gmra.mrb[0].mxu0 %v1231
      %v1372 = vpop.f32.mrb[0].mxu0
      %v1373 = vadd.f32 %v1185, %v1372
      %v1374 = vpop.f32.mrb[0].mxu0
      %1375 = vmatprep.mubr.f32.mxu0 0.0
      %1376 = vmatmul.mubr.f32.gmra.mrb[0].mxu0 %v1234
      %v1377 = vpop.f32.mrb[0].mxu0
      %v1378 = vadd.f32 %v1185, %v1377
      %v1379 = vpop.f32.mrb[0].mxu0
      %1380 = vdwg.mxu0
      %v1381 = vmul.f32 %v1303, 100.0
      %v1382 = vmul.f32 %v1308, 100.0
      %v1383 = vmul.f32 %v1313, 100.0
      %v1384 = vmul.f32 %v1318, 100.0
      %v1385 = vmul.f32 %v1323, 100.0
      %v1386 = vmul.f32 %v1328, 100.0
      %v1387 = vmul.f32 %v1333, 100.0
      %v1388 = vmul.f32 %v1338, 100.0
      %v1389 = vmul.f32 %v1343, 100.0
      %v1390 = vmul.f32 %v1348, 100.0
      %v1391 = vmul.f32 %v1353, 100.0
      %v1392 = vmul.f32 %v1358, 100.0
      %v1393 = vmul.f32 %v1363, 100.0
      %v1394 = vmul.f32 %v1368, 100.0
      %v1395 = vmul.f32 %v1373, 100.0
      %v1396 = vmul.f32 %v1378, 100.0
      %v1397 = vmin.f32 %v1381, 20.0
      %v1398 = vmin.f32 %v1382, 20.0
      %v1399 = vmin.f32 %v1383, 20.0
      %v1400 = vmin.f32 %v1384, 20.0
      %v1401 = vmin.f32 %v1385, 20.0
      %v1402 = vmin.f32 %v1386, 20.0
      %v1403 = vmin.f32 %v1387, 20.0
      %v1404 = vmin.f32 %v1388, 20.0
      %v1405 = vmin.f32 %v1389, 20.0
      %v1406 = vmin.f32 %v1390, 20.0
      %v1407 = vmin.f32 %v1391, 20.0
      %v1408 = vmin.f32 %v1392, 20.0
      %v1409 = vmin.f32 %v1393, 20.0
      %v1410 = vmin.f32 %v1394, 20.0
      %v1411 = vmin.f32 %v1395, 20.0
      %v1412 = vmin.f32 %v1396, 20.0
      %vm1413 = vcmp.gt.f32.partialorder %v1381, 20.0
      %vm1414 = vcmp.gt.f32.partialorder %v1382, 20.0
      %vm1415 = vcmp.gt.f32.partialorder %v1383, 20.0
      %vm1416 = vcmp.gt.f32.partialorder %v1384, 20.0
      %vm1417 = vcmp.gt.f32.partialorder %v1385, 20.0
      %vm1418 = vcmp.gt.f32.partialorder %v1386, 20.0
      %vm1419 = vcmp.gt.f32.partialorder %v1387, 20.0
      %vm1420 = vcmp.gt.f32.partialorder %v1388, 20.0
      %vm1421 = vcmp.gt.f32.partialorder %v1389, 20.0
      %vm1422 = vcmp.gt.f32.partialorder %v1390, 20.0
      %vm1423 = vcmp.gt.f32.partialorder %v1391, 20.0
      %vm1424 = vcmp.gt.f32.partialorder %v1392, 20.0
      %vm1425 = vcmp.gt.f32.partialorder %v1393, 20.0
      %vm1426 = vcmp.gt.f32.partialorder %v1394, 20.0
      %vm1427 = vcmp.gt.f32.partialorder %v1395, 20.0
      %vm1428 = vcmp.gt.f32.partialorder %v1396, 20.0
      %v1429 = vmul.f32 %v1397, 1.442695
      %v1430 = vpow.pop %v1429
      %v1431 = vmul.f32 %v1398, 1.442695
      %v1432 = vpow.pop %v1431
      %v1433 = vmul.f32 %v1399, 1.442695
      %v1434 = vpow.pop %v1433
      %v1435 = vmul.f32 %v1400, 1.442695
      %v1436 = vpow.pop %v1435
      %v1437 = vmul.f32 %v1401, 1.442695
      %v1438 = vpow.pop %v1437
      %v1439 = vmul.f32 %v1402, 1.442695
      %v1440 = vpow.pop %v1439
      %v1441 = vmul.f32 %v1403, 1.442695
      %v1442 = vpow.pop %v1441
      %v1443 = vmul.f32 %v1404, 1.442695
      %v1444 = vpow.pop %v1443
      %v1445 = vmul.f32 %v1405, 1.442695
      %v1446 = vpow.pop %v1445
      %v1447 = vmul.f32 %v1406, 1.442695
      %v1448 = vpow.pop %v1447
      %v1449 = vmul.f32 %v1407, 1.442695
      %v1450 = vpow.pop %v1449
      %v1451 = vmul.f32 %v1408, 1.442695
      %v1452 = vpow.pop %v1451
      %v1453 = vmul.f32 %v1409, 1.442695
      %v1454 = vpow.pop %v1453
      %v1455 = vmul.f32 %v1410, 1.442695
      %v1456 = vpow.pop %v1455
      %v1457 = vmul.f32 %v1411, 1.442695
      %v1458 = vpow.pop %v1457
      %v1459 = vmul.f32 %v1412, 1.442695
      %v1460 = vpow.pop %v1459
      %v1461 = vadd.f32 %v1430, 1.0
      %v1462 = vlog2.pop %v1461
      %v1463 = vmul.f32 %v1462, 0.6931472
      %v1464 = vmul.f32 -0.5, %v1430
      %v1465 = vadd.f32 %v1464, 1.0
      %v1466 = vmul.f32 %v1465, %v1430
      %v1467 = vand.u32 2147483647, %v1430
      %vm1468 = vcmp.lt.f32.partialorder %v1467, 0.0004427343
      %v1469 = vsel %vm1468, %v1466, %v1463
      %v1470 = vadd.f32 %v1432, 1.0
      %v1471 = vlog2.pop %v1470
      %v1472 = vmul.f32 %v1471, 0.6931472
      %v1473 = vmul.f32 -0.5, %v1432
      %v1474 = vadd.f32 %v1473, 1.0
      %v1475 = vmul.f32 %v1474, %v1432
      %v1476 = vand.u32 2147483647, %v1432
      %vm1477 = vcmp.lt.f32.partialorder %v1476, 0.0004427343
      %v1478 = vsel %vm1477, %v1475, %v1472
      %v1479 = vadd.f32 %v1434, 1.0
      %v1480 = vlog2.pop %v1479
      %v1481 = vmul.f32 %v1480, 0.6931472
      %v1482 = vmul.f32 -0.5, %v1434
      %v1483 = vadd.f32 %v1482, 1.0
      %v1484 = vmul.f32 %v1483, %v1434
      %v1485 = vand.u32 2147483647, %v1434
      %vm1486 = vcmp.lt.f32.partialorder %v1485, 0.0004427343
      %v1487 = vsel %vm1486, %v1484, %v1481
      %v1488 = vadd.f32 %v1436, 1.0
      %v1489 = vlog2.pop %v1488
      %v1490 = vmul.f32 %v1489, 0.6931472
      %v1491 = vmul.f32 -0.5, %v1436
      %v1492 = vadd.f32 %v1491, 1.0
      %v1493 = vmul.f32 %v1492, %v1436
      %v1494 = vand.u32 2147483647, %v1436
      %vm1495 = vcmp.lt.f32.partialorder %v1494, 0.0004427343
      %v1496 = vsel %vm1495, %v1493, %v1490
      %v1497 = vadd.f32 %v1438, 1.0
      %v1498 = vlog2.pop %v1497
      %v1499 = vmul.f32 %v1498, 0.6931472
      %v1500 = vmul.f32 -0.5, %v1438
      %v1501 = vadd.f32 %v1500, 1.0
      %v1502 = vmul.f32 %v1501, %v1438
      %v1503 = vand.u32 2147483647, %v1438
      %vm1504 = vcmp.lt.f32.partialorder %v1503, 0.0004427343
      %v1505 = vsel %vm1504, %v1502, %v1499
      %v1506 = vadd.f32 %v1440, 1.0
      %v1507 = vlog2.pop %v1506
      %v1508 = vmul.f32 %v1507, 0.6931472
      %v1509 = vmul.f32 -0.5, %v1440
      %v1510 = vadd.f32 %v1509, 1.0
      %v1511 = vmul.f32 %v1510, %v1440
      %v1512 = vand.u32 2147483647, %v1440
      %vm1513 = vcmp.lt.f32.partialorder %v1512, 0.0004427343
      %v1514 = vsel %vm1513, %v1511, %v1508
      %v1515 = vadd.f32 %v1442, 1.0
      %v1516 = vlog2.pop %v1515
      %v1517 = vmul.f32 %v1516, 0.6931472
      %v1518 = vmul.f32 -0.5, %v1442
      %v1519 = vadd.f32 %v1518, 1.0
      %v1520 = vmul.f32 %v1519, %v1442
      %v1521 = vand.u32 2147483647, %v1442
      %vm1522 = vcmp.lt.f32.partialorder %v1521, 0.0004427343
      %v1523 = vsel %vm1522, %v1520, %v1517
      %v1524 = vadd.f32 %v1444, 1.0
      %v1525 = vlog2.pop %v1524
      %v1526 = vmul.f32 %v1525, 0.6931472
      %v1527 = vmul.f32 -0.5, %v1444
      %v1528 = vadd.f32 %v1527, 1.0
      %v1529 = vmul.f32 %v1528, %v1444
      %v1530 = vand.u32 2147483647, %v1444
      %vm1531 = vcmp.lt.f32.partialorder %v1530, 0.0004427343
      %v1532 = vsel %vm1531, %v1529, %v1526
      %v1533 = vadd.f32 %v1446, 1.0
      %v1534 = vlog2.pop %v1533
      %v1535 = vmul.f32 %v1534, 0.6931472
      %v1536 = vmul.f32 -0.5, %v1446
      %v1537 = vadd.f32 %v1536, 1.0
      %v1538 = vmul.f32 %v1537, %v1446
      %v1539 = vand.u32 2147483647, %v1446
      %vm1540 = vcmp.lt.f32.partialorder %v1539, 0.0004427343
      %v1541 = vsel %vm1540, %v1538, %v1535
      %v1542 = vadd.f32 %v1448, 1.0
      %v1543 = vlog2.pop %v1542
      %v1544 = vmul.f32 %v1543, 0.6931472
      %v1545 = vmul.f32 -0.5, %v1448
      %v1546 = vadd.f32 %v1545, 1.0
      %v1547 = vmul.f32 %v1546, %v1448
      %v1548 = vand.u32 2147483647, %v1448
      %vm1549 = vcmp.lt.f32.partialorder %v1548, 0.0004427343
      %v1550 = vsel %vm1549, %v1547, %v1544
      %v1551 = vadd.f32 %v1450, 1.0
      %v1552 = vlog2.pop %v1551
      %v1553 = vmul.f32 %v1552, 0.6931472
      %v1554 = vmul.f32 -0.5, %v1450
      %v1555 = vadd.f32 %v1554, 1.0
      %v1556 = vmul.f32 %v1555, %v1450
      %v1557 = vand.u32 2147483647, %v1450
      %vm1558 = vcmp.lt.f32.partialorder %v1557, 0.0004427343
      %v1559 = vsel %vm1558, %v1556, %v1553
      %v1560 = vadd.f32 %v1452, 1.0
      %v1561 = vlog2.pop %v1560
      %v1562 = vmul.f32 %v1561, 0.6931472
      %v1563 = vmul.f32 -0.5, %v1452
      %v1564 = vadd.f32 %v1563, 1.0
      %v1565 = vmul.f32 %v1564, %v1452
      %v1566 = vand.u32 2147483647, %v1452
      %vm1567 = vcmp.lt.f32.partialorder %v1566, 0.0004427343
      %v1568 = vsel %vm1567, %v1565, %v1562
      %v1569 = vadd.f32 %v1454, 1.0
      %v1570 = vlog2.pop %v1569
      %v1571 = vmul.f32 %v1570, 0.6931472
      %v1572 = vmul.f32 -0.5, %v1454
      %v1573 = vadd.f32 %v1572, 1.0
      %v1574 = vmul.f32 %v1573, %v1454
      %v1575 = vand.u32 2147483647, %v1454
      %vm1576 = vcmp.lt.f32.partialorder %v1575, 0.0004427343
      %v1577 = vsel %vm1576, %v1574, %v1571
      %v1578 = vadd.f32 %v1456, 1.0
      %v1579 = vlog2.pop %v1578
      %v1580 = vmul.f32 %v1579, 0.6931472
      %v1581 = vmul.f32 -0.5, %v1456
      %v1582 = vadd.f32 %v1581, 1.0
      %v1583 = vmul.f32 %v1582, %v1456
      %v1584 = vand.u32 2147483647, %v1456
      %vm1585 = vcmp.lt.f32.partialorder %v1584, 0.0004427343
      %v1586 = vsel %vm1585, %v1583, %v1580
      %v1587 = vadd.f32 %v1458, 1.0
      %v1588 = vlog2.pop %v1587
      %v1589 = vmul.f32 %v1588, 0.6931472
      %v1590 = vmul.f32 -0.5, %v1458
      %v1591 = vadd.f32 %v1590, 1.0
      %v1592 = vmul.f32 %v1591, %v1458
      %v1593 = vand.u32 2147483647, %v1458
      %vm1594 = vcmp.lt.f32.partialorder %v1593, 0.0004427343
      %v1595 = vsel %vm1594, %v1592, %v1589
      %v1596 = vadd.f32 %v1460, 1.0
      %v1597 = vlog2.pop %v1596
      %v1598 = vmul.f32 %v1597, 0.6931472
      %v1599 = vmul.f32 -0.5, %v1460
      %v1600 = vadd.f32 %v1599, 1.0
      %v1601 = vmul.f32 %v1600, %v1460
      %v1602 = vand.u32 2147483647, %v1460
      %vm1603 = vcmp.lt.f32.partialorder %v1602, 0.0004427343
      %v1604 = vsel %vm1603, %v1601, %v1598
      %v1605 = vmul.f32 %v1469, %v1139
      %v1606 = vmul.f32 %v1478, %v1139
      %v1607 = vmul.f32 %v1487, %v1139
      %v1608 = vmul.f32 %v1496, %v1139
      %v1609 = vmul.f32 %v1505, %v1139
      %v1610 = vmul.f32 %v1514, %v1139
      %v1611 = vmul.f32 %v1523, %v1139
      %v1612 = vmul.f32 %v1532, %v1139
      %v1613 = vmul.f32 %v1541, %v1139
      %v1614 = vmul.f32 %v1550, %v1139
      %v1615 = vmul.f32 %v1559, %v1139
      %v1616 = vmul.f32 %v1568, %v1139
      %v1617 = vmul.f32 %v1577, %v1139
      %v1618 = vmul.f32 %v1586, %v1139
      %v1619 = vmul.f32 %v1595, %v1139
      %v1620 = vmul.f32 %v1604, %v1139
      %v1621 = vsel %vm1413, %v1303, %v1605
      %v1622 = vsel %vm1414, %v1308, %v1606
      %v1623 = vsel %vm1415, %v1313, %v1607
      %v1624 = vsel %vm1416, %v1318, %v1608
      %v1625 = vsel %vm1417, %v1323, %v1609
      %v1626 = vsel %vm1418, %v1328, %v1610
      %v1627 = vsel %vm1419, %v1333, %v1611
      %v1628 = vsel %vm1420, %v1338, %v1612
      %v1629 = vsel %vm1421, %v1343, %v1613
      %v1630 = vsel %vm1422, %v1348, %v1614
      %v1631 = vsel %vm1423, %v1353, %v1615
      %v1632 = vsel %vm1424, %v1358, %v1616
      %v1633 = vsel %vm1425, %v1363, %v1617
      %v1634 = vsel %vm1426, %v1368, %v1618
      %v1635 = vsel %vm1427, %v1373, %v1619
      %v1636 = vsel %vm1428, %v1378, %v1620
      %v1637 = vld [vmem:[%s7] sm:$0xff]
      %v1638 = vld [vmem:[%s7 + $0x8] sm:$0xff]
      %v1639 = vld [vmem:[%s7 + $0x10] sm:$0xff]
      %v1640 = vld [vmem:[%s7 + $0x18] sm:$0xff]
      %v1641 = vld [vmem:[%s7 + $0x20] sm:$0xff]
      %v1642 = vld [vmem:[%s7 + $0x28] sm:$0xff]
      %v1643 = vld [vmem:[%s7 + $0x30] sm:$0x1f]
      %v1644 = vld [vmem:[%s8] sm:$0x7]
      %v1646 = vsel %vm743, %v1644, 0
      %1648 = vmatprep.subr.mxu0 0.0
      %1649 = vmatpush1.msra.mxu0 %v1646
      %1650 = vmatprep.subr.mxu0 0.0
      %1651 = vmatpush1.msra.mxu0 0.0
      %1652 = vmatprep.subr.mxu0 0.0
      %1653 = vmatpush1.msra.mxu0 0.0
      %1654 = vmatprep.subr.mxu0 0.0
      %1655 = vmatpush1.msra.mxu0 0.0
      %1656 = vmatprep.subr.mxu0 0.0
      %1657 = vmatpush1.msra.mxu0 0.0
      %1658 = vmatprep.subr.mxu0 0.0
      %1659 = vmatpush1.msra.mxu0 0.0
      %1660 = vmatprep.subr.mxu0 0.0
      %1661 = vmatpush1.msra.mxu0 0.0
      %1662 = vmatprep.subr.mxu0 0.0
      %1663 = vmatpush1.msra.mxu0 0.0
      %1664 = vmatprep.subr.mxu0 0.0
      %1665 = vmatpush1.msra.mxu0 0.0
      %1666 = vmatprep.subr.mxu0 0.0
      %1667 = vmatpush1.msra.mxu0 0.0
      %1668 = vmatprep.subr.mxu0 0.0
      %1669 = vmatpush1.msra.mxu0 0.0
      %1670 = vmatprep.subr.mxu0 0.0
      %1671 = vmatpush1.msra.mxu0 0.0
      %1672 = vmatprep.subr.mxu0 0.0
      %1673 = vmatpush1.msra.mxu0 0.0
      %1674 = vmatprep.subr.mxu0 0.0
      %1675 = vmatpush1.msra.mxu0 0.0
      %1676 = vmatprep.subr.mxu0 0.0
      %1677 = vmatpush1.msra.mxu0 0.0
      %1678 = vmatprep.subr.mxu0 0.0
      %1679 = vmatpush1.msra.mxu0 0.0
      %1680 = vmatprep.subr.mxu0 0.0
      %1681 = vmatpush1.msra.mxu0 0.0
      %1682 = vmatprep.subr.mxu0 0.0
      %1683 = vmatpush1.msra.mxu0 0.0
      %1684 = vmatprep.subr.mxu0 0.0
      %1685 = vmatpush1.msra.mxu0 0.0
      %1686 = vmatprep.subr.mxu0 0.0
      %1687 = vmatpush1.msra.mxu0 0.0
      %1688 = vmatprep.subr.mxu0 0.0
      %1689 = vmatpush1.msra.mxu0 0.0
      %1690 = vmatprep.subr.mxu0 0.0
      %1691 = vmatpush1.msra.mxu0 0.0
      %1692 = vmatprep.subr.mxu0 0.0
      %1693 = vmatpush1.msra.mxu0 0.0
      %1694 = vmatprep.subr.mxu0 0.0
      %1695 = vmatpush1.msra.mxu0 0.0
      %1696 = vmatprep.subr.mxu0 0.0
      %1697 = vmatpush1.msra.mxu0 0.0
      %1698 = vmatprep.subr.mxu0 0.0
      %1699 = vmatpush1.msra.mxu0 0.0
      %1700 = vmatprep.subr.mxu0 0.0
      %1701 = vmatpush1.msra.mxu0 0.0
      %1702 = vmatprep.subr.mxu0 0.0
      %1703 = vmatpush1.msra.mxu0 0.0
      %1704 = vmatprep.subr.mxu0 0.0
      %1705 = vmatpush1.msra.mxu0 0.0
      %1706 = vmatprep.subr.mxu0 0.0
      %1707 = vmatpush1.msra.mxu0 0.0
      %1708 = vmatprep.subr.mxu0 0.0
      %1709 = vmatpush1.msra.mxu0 0.0
      %1710 = vmatprep.subr.mxu0 0.0
      %1711 = vmatpush1.msra.mxu0 0.0
      %1712 = vmatprep.mubr.f32.mxu0 0.0
      %1713 = vmatmul.mubr.f32.gmra.mrb[0].mxu0 %v696
      %v1714 = vpop.f32.mrb[0].mxu0
      %v1715 = vadd.f32 0.0, %v1714
      %v1716 = vpop.f32.mrb[0].mxu0
      %1717 = vmatprep.mubr.f32.mxu0 0.0
      %1718 = vmatmul.mubr.f32.gmra.mrb[0].mxu0 %v699
      %v1719 = vpop.f32.mrb[0].mxu0
      %v1720 = vadd.f32 0.0, %v1719
      %v1721 = vpop.f32.mrb[0].mxu0
      %1722 = vmatprep.mubr.f32.mxu0 0.0
      %1723 = vmatmul.mubr.f32.gmra.mrb[0].mxu0 %v702
      %v1724 = vpop.f32.mrb[0].mxu0
      %v1725 = vadd.f32 0.0, %v1724
      %v1726 = vpop.f32.mrb[0].mxu0
      %1727 = vmatprep.mubr.f32.mxu0 0.0
      %1728 = vmatmul.mubr.f32.gmra.mrb[0].mxu0 %v705
      %v1729 = vpop.f32.mrb[0].mxu0
      %v1730 = vadd.f32 0.0, %v1729
      %v1731 = vpop.f32.mrb[0].mxu0
      %1732 = vmatprep.mubr.f32.mxu0 0.0
      %1733 = vmatmul.mubr.f32.gmra.mrb[0].mxu0 %v708
      %v1734 = vpop.f32.mrb[0].mxu0
      %v1735 = vadd.f32 0.0, %v1734
      %v1736 = vpop.f32.mrb[0].mxu0
      %1737 = vmatprep.mubr.f32.mxu0 0.0
      %1738 = vmatmul.mubr.f32.gmra.mrb[0].mxu0 %v711
      %v1739 = vpop.f32.mrb[0].mxu0
      %v1740 = vadd.f32 0.0, %v1739
      %v1741 = vpop.f32.mrb[0].mxu0
      %1742 = vmatprep.mubr.f32.mxu0 0.0
      %1743 = vmatmul.mubr.f32.gmra.mrb[0].mxu0 %v714
      %v1744 = vpop.f32.mrb[0].mxu0
      %v1745 = vadd.f32 0.0, %v1744
      %v1746 = vpop.f32.mrb[0].mxu0
      %1747 = vmatprep.mubr.f32.mxu0 0.0
      %1748 = vmatmul.mubr.f32.gmra.mrb[0].mxu0 %v717
      %v1749 = vpop.f32.mrb[0].mxu0
      %v1750 = vadd.f32 0.0, %v1749
      %v1751 = vpop.f32.mrb[0].mxu0
      %1752 = vmatprep.mubr.f32.mxu0 0.0
      %1753 = vmatmul.mubr.f32.gmra.mrb[0].mxu0 %v720
      %v1754 = vpop.f32.mrb[0].mxu0
      %v1755 = vadd.f32 0.0, %v1754
      %v1756 = vpop.f32.mrb[0].mxu0
      %1757 = vmatprep.mubr.f32.mxu0 0.0
      %1758 = vmatmul.mubr.f32.gmra.mrb[0].mxu0 %v723
      %v1759 = vpop.f32.mrb[0].mxu0
      %v1760 = vadd.f32 0.0, %v1759
      %v1761 = vpop.f32.mrb[0].mxu0
      %1762 = vmatprep.mubr.f32.mxu0 0.0
      %1763 = vmatmul.mubr.f32.gmra.mrb[0].mxu0 %v726
      %v1764 = vpop.f32.mrb[0].mxu0
      %v1765 = vadd.f32 0.0, %v1764
      %v1766 = vpop.f32.mrb[0].mxu0
      %1767 = vmatprep.mubr.f32.mxu0 0.0
      %1768 = vmatmul.mubr.f32.gmra.mrb[0].mxu0 %v729
      %v1769 = vpop.f32.mrb[0].mxu0
      %v1770 = vadd.f32 0.0, %v1769
      %v1771 = vpop.f32.mrb[0].mxu0
      %1772 = vmatprep.mubr.f32.mxu0 0.0
      %1773 = vmatmul.mubr.f32.gmra.mrb[0].mxu0 %v732
      %v1774 = vpop.f32.mrb[0].mxu0
      %v1775 = vadd.f32 0.0, %v1774
      %v1776 = vpop.f32.mrb[0].mxu0
      %1777 = vmatprep.mubr.f32.mxu0 0.0
      %1778 = vmatmul.mubr.f32.gmra.mrb[0].mxu0 %v735
      %v1779 = vpop.f32.mrb[0].mxu0
      %v1780 = vadd.f32 0.0, %v1779
      %v1781 = vpop.f32.mrb[0].mxu0
      %1782 = vmatprep.mubr.f32.mxu0 0.0
      %1783 = vmatmul.mubr.f32.gmra.mrb[0].mxu0 %v738
      %v1784 = vpop.f32.mrb[0].mxu0
      %v1785 = vadd.f32 0.0, %v1784
      %v1786 = vpop.f32.mrb[0].mxu0
      %1787 = vmatprep.mubr.f32.mxu0 0.0
      %1788 = vmatmul.mubr.f32.gmra.mrb[0].mxu0 %v741
      %v1789 = vpop.f32.mrb[0].mxu0
      %v1790 = vadd.f32 0.0, %v1789
      %v1791 = vpop.f32.mrb[0].mxu0
      %1792 = vdwg.mxu0
      %vm1793 = vcmask 433152
      %v1795 = vsel %vm1793, %v1621, 0
      %v1798 = vsel %vm1793, %v1622, 0
      %v1801 = vsel %vm1793, %v1623, 0
      %v1804 = vsel %vm1793, %v1624, 0
      %v1807 = vsel %vm1793, %v1625, 0
      %v1810 = vsel %vm1793, %v1626, 0
      %v1813 = vsel %vm1793, %v1627, 0
      %v1816 = vsel %vm1793, %v1628, 0
      %v1819 = vsel %vm1793, %v1629, 0
      %v1822 = vsel %vm1793, %v1630, 0
      %v1825 = vsel %vm1793, %v1631, 0
      %v1828 = vsel %vm1793, %v1632, 0
      %v1831 = vsel %vm1793, %v1633, 0
      %v1834 = vsel %vm1793, %v1634, 0
      %v1837 = vsel %vm1793, %v1635, 0
      %v1840 = vsel %vm1793, %v1636, 0
      %vm1842 = vcmask 1044480
      %v1844 = vsel %vm1842, %v1643, 0
      %1846 = vmatprep.subr.mxu0 0.0
      %1847 = vmatpush1.msra.mxu0 %v1637
      %1848 = vmatprep.subr.mxu0 0.0
      %1849 = vmatpush1.msra.mxu0 %v1638
      %1850 = vmatprep.subr.mxu0 0.0
      %1851 = vmatpush1.msra.mxu0 %v1639
      %1852 = vmatprep.subr.mxu0 0.0
      %1853 = vmatpush1.msra.mxu0 %v1640
      %1854 = vmatprep.subr.mxu0 0.0
      %1855 = vmatpush1.msra.mxu0 %v1641
      %1856 = vmatprep.subr.mxu0 0.0
      %1857 = vmatpush1.msra.mxu0 %v1642
      %1858 = vmatprep.subr.mxu0 0.0
      %1859 = vmatpush1.msra.mxu0 %v1844
      %1860 = vmatprep.subr.mxu0 0.0
      %1861 = vmatpush1.msra.mxu0 0.0
      %1862 = vmatprep.subr.mxu0 0.0
      %1863 = vmatpush1.msra.mxu0 0.0
      %1864 = vmatprep.subr.mxu0 0.0
      %1865 = vmatpush1.msra.mxu0 0.0
      %1866 = vmatprep.subr.mxu0 0.0
      %1867 = vmatpush1.msra.mxu0 0.0
      %1868 = vmatprep.subr.mxu0 0.0
      %1869 = vmatpush1.msra.mxu0 0.0
      %1870 = vmatprep.subr.mxu0 0.0
      %1871 = vmatpush1.msra.mxu0 0.0
      %1872 = vmatprep.subr.mxu0 0.0
      %1873 = vmatpush1.msra.mxu0 0.0
      %1874 = vmatprep.subr.mxu0 0.0
      %1875 = vmatpush1.msra.mxu0 0.0
      %1876 = vmatprep.subr.mxu0 0.0
      %1877 = vmatpush1.msra.mxu0 0.0
      %1878 = vmatprep.subr.mxu0 0.0
      %1879 = vmatpush1.msra.mxu0 0.0
      %1880 = vmatprep.subr.mxu0 0.0
      %1881 = vmatpush1.msra.mxu0 0.0
      %1882 = vmatprep.subr.mxu0 0.0
      %1883 = vmatpush1.msra.mxu0 0.0
      %1884 = vmatprep.subr.mxu0 0.0
      %1885 = vmatpush1.msra.mxu0 0.0
      %1886 = vmatprep.subr.mxu0 0.0
      %1887 = vmatpush1.msra.mxu0 0.0
      %1888 = vmatprep.subr.mxu0 0.0
      %1889 = vmatpush1.msra.mxu0 0.0
      %1890 = vmatprep.subr.mxu0 0.0
      %1891 = vmatpush1.msra.mxu0 0.0
      %1892 = vmatprep.subr.mxu0 0.0
      %1893 = vmatpush1.msra.mxu0 0.0
      %1894 = vmatprep.subr.mxu0 0.0
      %1895 = vmatpush1.msra.mxu0 0.0
      %1896 = vmatprep.subr.mxu0 0.0
      %1897 = vmatpush1.msra.mxu0 0.0
      %1898 = vmatprep.subr.mxu0 0.0
      %1899 = vmatpush1.msra.mxu0 0.0
      %1900 = vmatprep.subr.mxu0 0.0
      %1901 = vmatpush1.msra.mxu0 0.0
      %1902 = vmatprep.subr.mxu0 0.0
      %1903 = vmatpush1.msra.mxu0 0.0
      %1904 = vmatprep.subr.mxu0 0.0
      %1905 = vmatpush1.msra.mxu0 0.0
      %1906 = vmatprep.subr.mxu0 0.0
      %1907 = vmatpush1.msra.mxu0 0.0
      %1908 = vmatprep.subr.mxu0 0.0
      %1909 = vmatpush1.msra.mxu0 0.0
      %1910 = vmatprep.mubr.f32.mxu0 0.0
      %1911 = vmatmul.mubr.f32.gmra.mrb[0].mxu0 %v1795
      %v1912 = vpop.f32.mrb[0].mxu0
      %v1913 = vadd.f32 %v1715, %v1912
      %v1914 = vpop.f32.mrb[0].mxu0
      %1915 = vmatprep.mubr.f32.mxu0 0.0
      %1916 = vmatmul.mubr.f32.gmra.mrb[0].mxu0 %v1798
      %v1917 = vpop.f32.mrb[0].mxu0
      %v1918 = vadd.f32 %v1720, %v1917
      %v1919 = vpop.f32.mrb[0].mxu0
      %1920 = vmatprep.mubr.f32.mxu0 0.0
      %1921 = vmatmul.mubr.f32.gmra.mrb[0].mxu0 %v1801
      %v1922 = vpop.f32.mrb[0].mxu0
      %v1923 = vadd.f32 %v1725, %v1922
      %v1924 = vpop.f32.mrb[0].mxu0
      %1925 = vmatprep.mubr.f32.mxu0 0.0
      %1926 = vmatmul.mubr.f32.gmra.mrb[0].mxu0 %v1804
      %v1927 = vpop.f32.mrb[0].mxu0
      %v1928 = vadd.f32 %v1730, %v1927
      %v1929 = vpop.f32.mrb[0].mxu0
      %1930 = vmatprep.mubr.f32.mxu0 0.0
      %1931 = vmatmul.mubr.f32.gmra.mrb[0].mxu0 %v1807
      %v1932 = vpop.f32.mrb[0].mxu0
      %v1933 = vadd.f32 %v1735, %v1932
      %v1934 = vpop.f32.mrb[0].mxu0
      %1935 = vmatprep.mubr.f32.mxu0 0.0
      %1936 = vmatmul.mubr.f32.gmra.mrb[0].mxu0 %v1810
      %v1937 = vpop.f32.mrb[0].mxu0
      %v1938 = vadd.f32 %v1740, %v1937
      %v1939 = vpop.f32.mrb[0].mxu0
      %1940 = vmatprep.mubr.f32.mxu0 0.0
      %1941 = vmatmul.mubr.f32.gmra.mrb[0].mxu0 %v1813
      %v1942 = vpop.f32.mrb[0].mxu0
      %v1943 = vadd.f32 %v1745, %v1942
      %v1944 = vpop.f32.mrb[0].mxu0
      %1945 = vmatprep.mubr.f32.mxu0 0.0
      %1946 = vmatmul.mubr.f32.gmra.mrb[0].mxu0 %v1816
      %v1947 = vpop.f32.mrb[0].mxu0
      %v1948 = vadd.f32 %v1750, %v1947
      %v1949 = vpop.f32.mrb[0].mxu0
      %1950 = vmatprep.mubr.f32.mxu0 0.0
      %1951 = vmatmul.mubr.f32.gmra.mrb[0].mxu0 %v1819
      %v1952 = vpop.f32.mrb[0].mxu0
      %v1953 = vadd.f32 %v1755, %v1952
      %v1954 = vpop.f32.mrb[0].mxu0
      %1955 = vmatprep.mubr.f32.mxu0 0.0
      %1956 = vmatmul.mubr.f32.gmra.mrb[0].mxu0 %v1822
      %v1957 = vpop.f32.mrb[0].mxu0
      %v1958 = vadd.f32 %v1760, %v1957
      %v1959 = vpop.f32.mrb[0].mxu0
      %1960 = vmatprep.mubr.f32.mxu0 0.0
      %1961 = vmatmul.mubr.f32.gmra.mrb[0].mxu0 %v1825
      %v1962 = vpop.f32.mrb[0].mxu0
      %v1963 = vadd.f32 %v1765, %v1962
      %v1964 = vpop.f32.mrb[0].mxu0
      %1965 = vmatprep.mubr.f32.mxu0 0.0
      %1966 = vmatmul.mubr.f32.gmra.mrb[0].mxu0 %v1828
      %v1967 = vpop.f32.mrb[0].mxu0
      %v1968 = vadd.f32 %v1770, %v1967
      %v1969 = vpop.f32.mrb[0].mxu0
      %1970 = vmatprep.mubr.f32.mxu0 0.0
      %1971 = vmatmul.mubr.f32.gmra.mrb[0].mxu0 %v1831
      %v1972 = vpop.f32.mrb[0].mxu0
      %v1973 = vadd.f32 %v1775, %v1972
      %v1974 = vpop.f32.mrb[0].mxu0
      %1975 = vmatprep.mubr.f32.mxu0 0.0
      %1976 = vmatmul.mubr.f32.gmra.mrb[0].mxu0 %v1834
      %v1977 = vpop.f32.mrb[0].mxu0
      %v1978 = vadd.f32 %v1780, %v1977
      %v1979 = vpop.f32.mrb[0].mxu0
      %1980 = vmatprep.mubr.f32.mxu0 0.0
      %1981 = vmatmul.mubr.f32.gmra.mrb[0].mxu0 %v1837
      %v1982 = vpop.f32.mrb[0].mxu0
      %v1983 = vadd.f32 %v1785, %v1982
      %v1984 = vpop.f32.mrb[0].mxu0
      %1985 = vmatprep.mubr.f32.mxu0 0.0
      %1986 = vmatmul.mubr.f32.gmra.mrb[0].mxu0 %v1840
      %v1987 = vpop.f32.mrb[0].mxu0
      %v1988 = vadd.f32 %v1790, %v1987
      %v1989 = vpop.f32.mrb[0].mxu0
      %1990 = vdwg.mxu0
      %v1991 = vld [vmem:[%s9] sm:$0xff]
      %1992 = vmatprep.subr.mxu0 0.0
      %1993 = vmatpush1.msra.mxu0 %v1991
      %1994 = vmatprep.subr.mxu0 0.0
      %1995 = vmatpush1.msra.mxu0 0.0
      %1996 = vmatprep.subr.mxu0 0.0
      %1997 = vmatpush1.msra.mxu0 0.0
      %1998 = vmatprep.subr.mxu0 0.0
      %1999 = vmatpush1.msra.mxu0 0.0
      %2000 = vmatprep.subr.mxu0 0.0
      %2001 = vmatpush1.msra.mxu0 0.0
      %2002 = vmatprep.subr.mxu0 0.0
      %2003 = vmatpush1.msra.mxu0 0.0
      %2004 = vmatprep.subr.mxu0 0.0
      %2005 = vmatpush1.msra.mxu0 0.0
      %2006 = vmatprep.subr.mxu0 0.0
      %2007 = vmatpush1.msra.mxu0 0.0
      %2008 = vmatprep.subr.mxu0 0.0
      %2009 = vmatpush1.msra.mxu0 0.0
      %2010 = vmatprep.subr.mxu0 0.0
      %2011 = vmatpush1.msra.mxu0 0.0
      %2012 = vmatprep.subr.mxu0 0.0
      %2013 = vmatpush1.msra.mxu0 0.0
      %2014 = vmatprep.subr.mxu0 0.0
      %2015 = vmatpush1.msra.mxu0 0.0
      %2016 = vmatprep.subr.mxu0 0.0
      %2017 = vmatpush1.msra.mxu0 0.0
      %2018 = vmatprep.subr.mxu0 0.0
      %2019 = vmatpush1.msra.mxu0 0.0
      %2020 = vmatprep.subr.mxu0 0.0
      %2021 = vmatpush1.msra.mxu0 0.0
      %2022 = vmatprep.subr.mxu0 0.0
      %2023 = vmatpush1.msra.mxu0 0.0
      %2024 = vmatprep.subr.mxu0 0.0
      %2025 = vmatpush1.msra.mxu0 0.0
      %2026 = vmatprep.subr.mxu0 0.0
      %2027 = vmatpush1.msra.mxu0 0.0
      %2028 = vmatprep.subr.mxu0 0.0
      %2029 = vmatpush1.msra.mxu0 0.0
      %2030 = vmatprep.subr.mxu0 0.0
      %2031 = vmatpush1.msra.mxu0 0.0
      %2032 = vmatprep.subr.mxu0 0.0
      %2033 = vmatpush1.msra.mxu0 0.0
      %2034 = vmatprep.subr.mxu0 0.0
      %2035 = vmatpush1.msra.mxu0 0.0
      %2036 = vmatprep.subr.mxu0 0.0
      %2037 = vmatpush1.msra.mxu0 0.0
      %2038 = vmatprep.subr.mxu0 0.0
      %2039 = vmatpush1.msra.mxu0 0.0
      %2040 = vmatprep.subr.mxu0 0.0
      %2041 = vmatpush1.msra.mxu0 0.0
      %2042 = vmatprep.subr.mxu0 0.0
      %2043 = vmatpush1.msra.mxu0 0.0
      %2044 = vmatprep.subr.mxu0 0.0
      %2045 = vmatpush1.msra.mxu0 0.0
      %2046 = vmatprep.subr.mxu0 0.0
      %2047 = vmatpush1.msra.mxu0 0.0
      %2048 = vmatprep.subr.mxu0 0.0
      %2049 = vmatpush1.msra.mxu0 0.0
      %2050 = vmatprep.subr.mxu0 0.0
      %2051 = vmatpush1.msra.mxu0 0.0
      %2052 = vmatprep.subr.mxu0 0.0
      %2053 = vmatpush1.msra.mxu0 0.0
      %2054 = vmatprep.subr.mxu0 0.0
      %2055 = vmatpush1.msra.mxu0 0.0
      %2056 = vmatprep.mubr.f32.mxu0 0.0
      %2057 = vmatmul.mubr.f32.gmra.mrb[0].mxu0 %v502
      %v2058 = vpop.f32.mrb[0].mxu0
      %v2059 = vadd.f32 0.0, %v2058
      %v2060 = vpop.f32.mrb[0].mxu0
      %2061 = vmatprep.mubr.f32.mxu0 0.0
      %2062 = vmatmul.mubr.f32.gmra.mrb[0].mxu0 %v505
      %v2063 = vpop.f32.mrb[0].mxu0
      %v2064 = vadd.f32 0.0, %v2063
      %v2065 = vpop.f32.mrb[0].mxu0
      %2066 = vmatprep.mubr.f32.mxu0 0.0
      %2067 = vmatmul.mubr.f32.gmra.mrb[0].mxu0 %v508
      %v2068 = vpop.f32.mrb[0].mxu0
      %v2069 = vadd.f32 0.0, %v2068
      %v2070 = vpop.f32.mrb[0].mxu0
      %2071 = vmatprep.mubr.f32.mxu0 0.0
      %2072 = vmatmul.mubr.f32.gmra.mrb[0].mxu0 %v511
      %v2073 = vpop.f32.mrb[0].mxu0
      %v2074 = vadd.f32 0.0, %v2073
      %v2075 = vpop.f32.mrb[0].mxu0
      %2076 = vmatprep.mubr.f32.mxu0 0.0
      %2077 = vmatmul.mubr.f32.gmra.mrb[0].mxu0 %v514
      %v2078 = vpop.f32.mrb[0].mxu0
      %v2079 = vadd.f32 0.0, %v2078
      %v2080 = vpop.f32.mrb[0].mxu0
      %2081 = vmatprep.mubr.f32.mxu0 0.0
      %2082 = vmatmul.mubr.f32.gmra.mrb[0].mxu0 %v517
      %v2083 = vpop.f32.mrb[0].mxu0
      %v2084 = vadd.f32 0.0, %v2083
      %v2085 = vpop.f32.mrb[0].mxu0
      %2086 = vmatprep.mubr.f32.mxu0 0.0
      %2087 = vmatmul.mubr.f32.gmra.mrb[0].mxu0 %v520
      %v2088 = vpop.f32.mrb[0].mxu0
      %v2089 = vadd.f32 0.0, %v2088
      %v2090 = vpop.f32.mrb[0].mxu0
      %2091 = vmatprep.mubr.f32.mxu0 0.0
      %2092 = vmatmul.mubr.f32.gmra.mrb[0].mxu0 %v523
      %v2093 = vpop.f32.mrb[0].mxu0
      %v2094 = vadd.f32 0.0, %v2093
      %v2095 = vpop.f32.mrb[0].mxu0
      %2096 = vmatprep.mubr.f32.mxu0 0.0
      %2097 = vmatmul.mubr.f32.gmra.mrb[0].mxu0 %v526
      %v2098 = vpop.f32.mrb[0].mxu0
      %v2099 = vadd.f32 0.0, %v2098
      %v2100 = vpop.f32.mrb[0].mxu0
      %2101 = vmatprep.mubr.f32.mxu0 0.0
      %2102 = vmatmul.mubr.f32.gmra.mrb[0].mxu0 %v529
      %v2103 = vpop.f32.mrb[0].mxu0
      %v2104 = vadd.f32 0.0, %v2103
      %v2105 = vpop.f32.mrb[0].mxu0
      %2106 = vmatprep.mubr.f32.mxu0 0.0
      %2107 = vmatmul.mubr.f32.gmra.mrb[0].mxu0 %v532
      %v2108 = vpop.f32.mrb[0].mxu0
      %v2109 = vadd.f32 0.0, %v2108
      %v2110 = vpop.f32.mrb[0].mxu0
      %2111 = vmatprep.mubr.f32.mxu0 0.0
      %2112 = vmatmul.mubr.f32.gmra.mrb[0].mxu0 %v535
      %v2113 = vpop.f32.mrb[0].mxu0
      %v2114 = vadd.f32 0.0, %v2113
      %v2115 = vpop.f32.mrb[0].mxu0
      %2116 = vmatprep.mubr.f32.mxu0 0.0
      %2117 = vmatmul.mubr.f32.gmra.mrb[0].mxu0 %v538
      %v2118 = vpop.f32.mrb[0].mxu0
      %v2119 = vadd.f32 0.0, %v2118
      %v2120 = vpop.f32.mrb[0].mxu0
      %2121 = vmatprep.mubr.f32.mxu0 0.0
      %2122 = vmatmul.mubr.f32.gmra.mrb[0].mxu0 %v541
      %v2123 = vpop.f32.mrb[0].mxu0
      %v2124 = vadd.f32 0.0, %v2123
      %v2125 = vpop.f32.mrb[0].mxu0
      %2126 = vmatprep.mubr.f32.mxu0 0.0
      %2127 = vmatmul.mubr.f32.gmra.mrb[0].mxu0 %v544
      %v2128 = vpop.f32.mrb[0].mxu0
      %v2129 = vadd.f32 0.0, %v2128
      %v2130 = vpop.f32.mrb[0].mxu0
      %2131 = vmatprep.mubr.f32.mxu0 0.0
      %2132 = vmatmul.mubr.f32.gmra.mrb[0].mxu0 %v547
      %v2133 = vpop.f32.mrb[0].mxu0
      %v2134 = vadd.f32 0.0, %v2133
      %v2135 = vpop.f32.mrb[0].mxu0
      %2136 = vdwg.mxu0
      %v2137 = vadd.f32 %v1913, %v2059
      %v2138 = vadd.f32 %v1918, %v2064
      %v2139 = vadd.f32 %v1923, %v2069
      %v2140 = vadd.f32 %v1928, %v2074
      %v2141 = vadd.f32 %v1933, %v2079
      %v2142 = vadd.f32 %v1938, %v2084
      %v2143 = vadd.f32 %v1943, %v2089
      %v2144 = vadd.f32 %v1948, %v2094
      %v2145 = vadd.f32 %v1953, %v2099
      %v2146 = vadd.f32 %v1958, %v2104
      %v2147 = vadd.f32 %v1963, %v2109
      %v2148 = vadd.f32 %v1968, %v2114
      %v2149 = vadd.f32 %v1973, %v2119
      %v2150 = vadd.f32 %v1978, %v2124
      %v2151 = vadd.f32 %v1983, %v2129
      %v2152 = vadd.f32 %v1988, %v2134
      %v2153 = vld [vmem:[%s10] sm:$0x1]
      %v2155 = vlaneseq
      %v2156 = vshrl.u32 %v2155, 7
      %v2157 = vsub.s32 0, %v2156
      %v2158 = vrot.slane %v2153, %v2157
      %v2160 = vadd.f32 %v2137, %v2158
      %v2161 = vadd.f32 %v2138, %v2158
      %v2162 = vadd.f32 %v2139, %v2158
      %v2163 = vadd.f32 %v2140, %v2158
      %v2164 = vadd.f32 %v2141, %v2158
      %v2165 = vadd.f32 %v2142, %v2158
      %v2166 = vadd.f32 %v2143, %v2158
      %v2167 = vadd.f32 %v2144, %v2158
      %v2168 = vadd.f32 %v2145, %v2158
      %v2169 = vadd.f32 %v2146, %v2158
      %v2170 = vadd.f32 %v2147, %v2158
      %v2171 = vadd.f32 %v2148, %v2158
      %v2172 = vadd.f32 %v2149, %v2158
      %v2173 = vadd.f32 %v2150, %v2158
      %v2174 = vadd.f32 %v2151, %v2158
      %v2175 = vadd.f32 %v2152, %v2158
      %v2176 = vmul.f32 %v2160, 100.0
      %v2177 = vmul.f32 %v2161, 100.0
      %v2178 = vmul.f32 %v2162, 100.0
      %v2179 = vmul.f32 %v2163, 100.0
      %v2180 = vmul.f32 %v2164, 100.0
      %v2181 = vmul.f32 %v2165, 100.0
      %v2182 = vmul.f32 %v2166, 100.0
      %v2183 = vmul.f32 %v2167, 100.0
      %v2184 = vmul.f32 %v2168, 100.0
      %v2185 = vmul.f32 %v2169, 100.0
      %v2186 = vmul.f32 %v2170, 100.0
      %v2187 = vmul.f32 %v2171, 100.0
      %v2188 = vmul.f32 %v2172, 100.0
      %v2189 = vmul.f32 %v2173, 100.0
      %v2190 = vmul.f32 %v2174, 100.0
      %v2191 = vmul.f32 %v2175, 100.0
      %v2192 = vmin.f32 %v2176, 20.0
      %v2193 = vmin.f32 %v2177, 20.0
      %v2194 = vmin.f32 %v2178, 20.0
      %v2195 = vmin.f32 %v2179, 20.0
      %v2196 = vmin.f32 %v2180, 20.0
      %v2197 = vmin.f32 %v2181, 20.0
      %v2198 = vmin.f32 %v2182, 20.0
      %v2199 = vmin.f32 %v2183, 20.0
      %v2200 = vmin.f32 %v2184, 20.0
      %v2201 = vmin.f32 %v2185, 20.0
      %v2202 = vmin.f32 %v2186, 20.0
      %v2203 = vmin.f32 %v2187, 20.0
      %v2204 = vmin.f32 %v2188, 20.0
      %v2205 = vmin.f32 %v2189, 20.0
      %v2206 = vmin.f32 %v2190, 20.0
      %v2207 = vmin.f32 %v2191, 20.0
      %vm2208 = vcmp.gt.f32.partialorder %v2176, 20.0
      %vm2209 = vcmp.gt.f32.partialorder %v2177, 20.0
      %vm2210 = vcmp.gt.f32.partialorder %v2178, 20.0
      %vm2211 = vcmp.gt.f32.partialorder %v2179, 20.0
      %vm2212 = vcmp.gt.f32.partialorder %v2180, 20.0
      %vm2213 = vcmp.gt.f32.partialorder %v2181, 20.0
      %vm2214 = vcmp.gt.f32.partialorder %v2182, 20.0
      %vm2215 = vcmp.gt.f32.partialorder %v2183, 20.0
      %vm2216 = vcmp.gt.f32.partialorder %v2184, 20.0
      %vm2217 = vcmp.gt.f32.partialorder %v2185, 20.0
      %vm2218 = vcmp.gt.f32.partialorder %v2186, 20.0
      %vm2219 = vcmp.gt.f32.partialorder %v2187, 20.0
      %vm2220 = vcmp.gt.f32.partialorder %v2188, 20.0
      %vm2221 = vcmp.gt.f32.partialorder %v2189, 20.0
      %vm2222 = vcmp.gt.f32.partialorder %v2190, 20.0
      %vm2223 = vcmp.gt.f32.partialorder %v2191, 20.0
      %v2224 = vmul.f32 %v2192, 1.442695
      %v2225 = vpow.pop %v2224
      %v2226 = vmul.f32 %v2193, 1.442695
      %v2227 = vpow.pop %v2226
      %v2228 = vmul.f32 %v2194, 1.442695
      %v2229 = vpow.pop %v2228
      %v2230 = vmul.f32 %v2195, 1.442695
      %v2231 = vpow.pop %v2230
      %v2232 = vmul.f32 %v2196, 1.442695
      %v2233 = vpow.pop %v2232
      %v2234 = vmul.f32 %v2197, 1.442695
      %v2235 = vpow.pop %v2234
      %v2236 = vmul.f32 %v2198, 1.442695
      %v2237 = vpow.pop %v2236
      %v2238 = vmul.f32 %v2199, 1.442695
      %v2239 = vpow.pop %v2238
      %v2240 = vmul.f32 %v2200, 1.442695
      %v2241 = vpow.pop %v2240
      %v2242 = vmul.f32 %v2201, 1.442695
      %v2243 = vpow.pop %v2242
      %v2244 = vmul.f32 %v2202, 1.442695
      %v2245 = vpow.pop %v2244
      %v2246 = vmul.f32 %v2203, 1.442695
      %v2247 = vpow.pop %v2246
      %v2248 = vmul.f32 %v2204, 1.442695
      %v2249 = vpow.pop %v2248
      %v2250 = vmul.f32 %v2205, 1.442695
      %v2251 = vpow.pop %v2250
      %v2252 = vmul.f32 %v2206, 1.442695
      %v2253 = vpow.pop %v2252
      %v2254 = vmul.f32 %v2207, 1.442695
      %v2255 = vpow.pop %v2254
      %v2256 = vadd.f32 %v2225, 1.0
      %v2257 = vlog2.pop %v2256
      %v2258 = vmul.f32 %v2257, 0.6931472
      %v2259 = vmul.f32 -0.5, %v2225
      %v2260 = vadd.f32 %v2259, 1.0
      %v2261 = vmul.f32 %v2260, %v2225
      %v2262 = vand.u32 2147483647, %v2225
      %vm2263 = vcmp.lt.f32.partialorder %v2262, 0.0004427343
      %v2264 = vsel %vm2263, %v2261, %v2258
      %v2265 = vadd.f32 %v2227, 1.0
      %v2266 = vlog2.pop %v2265
      %v2267 = vmul.f32 %v2266, 0.6931472
      %v2268 = vmul.f32 -0.5, %v2227
      %v2269 = vadd.f32 %v2268, 1.0
      %v2270 = vmul.f32 %v2269, %v2227
      %v2271 = vand.u32 2147483647, %v2227
      %vm2272 = vcmp.lt.f32.partialorder %v2271, 0.0004427343
      %v2273 = vsel %vm2272, %v2270, %v2267
      %v2274 = vadd.f32 %v2229, 1.0
      %v2275 = vlog2.pop %v2274
      %v2276 = vmul.f32 %v2275, 0.6931472
      %v2277 = vmul.f32 -0.5, %v2229
      %v2278 = vadd.f32 %v2277, 1.0
      %v2279 = vmul.f32 %v2278, %v2229
      %v2280 = vand.u32 2147483647, %v2229
      %vm2281 = vcmp.lt.f32.partialorder %v2280, 0.0004427343
      %v2282 = vsel %vm2281, %v2279, %v2276
      %v2283 = vadd.f32 %v2231, 1.0
      %v2284 = vlog2.pop %v2283
      %v2285 = vmul.f32 %v2284, 0.6931472
      %v2286 = vmul.f32 -0.5, %v2231
      %v2287 = vadd.f32 %v2286, 1.0
      %v2288 = vmul.f32 %v2287, %v2231
      %v2289 = vand.u32 2147483647, %v2231
      %vm2290 = vcmp.lt.f32.partialorder %v2289, 0.0004427343
      %v2291 = vsel %vm2290, %v2288, %v2285
      %v2292 = vadd.f32 %v2233, 1.0
      %v2293 = vlog2.pop %v2292
      %v2294 = vmul.f32 %v2293, 0.6931472
      %v2295 = vmul.f32 -0.5, %v2233
      %v2296 = vadd.f32 %v2295, 1.0
      %v2297 = vmul.f32 %v2296, %v2233
      %v2298 = vand.u32 2147483647, %v2233
      %vm2299 = vcmp.lt.f32.partialorder %v2298, 0.0004427343
      %v2300 = vsel %vm2299, %v2297, %v2294
      %v2301 = vadd.f32 %v2235, 1.0
      %v2302 = vlog2.pop %v2301
      %v2303 = vmul.f32 %v2302, 0.6931472
      %v2304 = vmul.f32 -0.5, %v2235
      %v2305 = vadd.f32 %v2304, 1.0
      %v2306 = vmul.f32 %v2305, %v2235
      %v2307 = vand.u32 2147483647, %v2235
      %vm2308 = vcmp.lt.f32.partialorder %v2307, 0.0004427343
      %v2309 = vsel %vm2308, %v2306, %v2303
      %v2310 = vadd.f32 %v2237, 1.0
      %v2311 = vlog2.pop %v2310
      %v2312 = vmul.f32 %v2311, 0.6931472
      %v2313 = vmul.f32 -0.5, %v2237
      %v2314 = vadd.f32 %v2313, 1.0
      %v2315 = vmul.f32 %v2314, %v2237
      %v2316 = vand.u32 2147483647, %v2237
      %vm2317 = vcmp.lt.f32.partialorder %v2316, 0.0004427343
      %v2318 = vsel %vm2317, %v2315, %v2312
      %v2319 = vadd.f32 %v2239, 1.0
      %v2320 = vlog2.pop %v2319
      %v2321 = vmul.f32 %v2320, 0.6931472
      %v2322 = vmul.f32 -0.5, %v2239
      %v2323 = vadd.f32 %v2322, 1.0
      %v2324 = vmul.f32 %v2323, %v2239
      %v2325 = vand.u32 2147483647, %v2239
      %vm2326 = vcmp.lt.f32.partialorder %v2325, 0.0004427343
      %v2327 = vsel %vm2326, %v2324, %v2321
      %v2328 = vadd.f32 %v2241, 1.0
      %v2329 = vlog2.pop %v2328
      %v2330 = vmul.f32 %v2329, 0.6931472
      %v2331 = vmul.f32 -0.5, %v2241
      %v2332 = vadd.f32 %v2331, 1.0
      %v2333 = vmul.f32 %v2332, %v2241
      %v2334 = vand.u32 2147483647, %v2241
      %vm2335 = vcmp.lt.f32.partialorder %v2334, 0.0004427343
      %v2336 = vsel %vm2335, %v2333, %v2330
      %v2337 = vadd.f32 %v2243, 1.0
      %v2338 = vlog2.pop %v2337
      %v2339 = vmul.f32 %v2338, 0.6931472
      %v2340 = vmul.f32 -0.5, %v2243
      %v2341 = vadd.f32 %v2340, 1.0
      %v2342 = vmul.f32 %v2341, %v2243
      %v2343 = vand.u32 2147483647, %v2243
      %vm2344 = vcmp.lt.f32.partialorder %v2343, 0.0004427343
      %v2345 = vsel %vm2344, %v2342, %v2339
      %v2346 = vadd.f32 %v2245, 1.0
      %v2347 = vlog2.pop %v2346
      %v2348 = vmul.f32 %v2347, 0.6931472
      %v2349 = vmul.f32 -0.5, %v2245
      %v2350 = vadd.f32 %v2349, 1.0
      %v2351 = vmul.f32 %v2350, %v2245
      %v2352 = vand.u32 2147483647, %v2245
      %vm2353 = vcmp.lt.f32.partialorder %v2352, 0.0004427343
      %v2354 = vsel %vm2353, %v2351, %v2348
      %v2355 = vadd.f32 %v2247, 1.0
      %v2356 = vlog2.pop %v2355
      %v2357 = vmul.f32 %v2356, 0.6931472
      %v2358 = vmul.f32 -0.5, %v2247
      %v2359 = vadd.f32 %v2358, 1.0
      %v2360 = vmul.f32 %v2359, %v2247
      %v2361 = vand.u32 2147483647, %v2247
      %vm2362 = vcmp.lt.f32.partialorder %v2361, 0.0004427343
      %v2363 = vsel %vm2362, %v2360, %v2357
      %v2364 = vadd.f32 %v2249, 1.0
      %v2365 = vlog2.pop %v2364
      %v2366 = vmul.f32 %v2365, 0.6931472
      %v2367 = vmul.f32 -0.5, %v2249
      %v2368 = vadd.f32 %v2367, 1.0
      %v2369 = vmul.f32 %v2368, %v2249
      %v2370 = vand.u32 2147483647, %v2249
      %vm2371 = vcmp.lt.f32.partialorder %v2370, 0.0004427343
      %v2372 = vsel %vm2371, %v2369, %v2366
      %v2373 = vadd.f32 %v2251, 1.0
      %v2374 = vlog2.pop %v2373
      %v2375 = vmul.f32 %v2374, 0.6931472
      %v2376 = vmul.f32 -0.5, %v2251
      %v2377 = vadd.f32 %v2376, 1.0
      %v2378 = vmul.f32 %v2377, %v2251
      %v2379 = vand.u32 2147483647, %v2251
      %vm2380 = vcmp.lt.f32.partialorder %v2379, 0.0004427343
      %v2381 = vsel %vm2380, %v2378, %v2375
      %v2382 = vadd.f32 %v2253, 1.0
      %v2383 = vlog2.pop %v2382
      %v2384 = vmul.f32 %v2383, 0.6931472
      %v2385 = vmul.f32 -0.5, %v2253
      %v2386 = vadd.f32 %v2385, 1.0
      %v2387 = vmul.f32 %v2386, %v2253
      %v2388 = vand.u32 2147483647, %v2253
      %vm2389 = vcmp.lt.f32.partialorder %v2388, 0.0004427343
      %v2390 = vsel %vm2389, %v2387, %v2384
      %v2391 = vadd.f32 %v2255, 1.0
      %v2392 = vlog2.pop %v2391
      %v2393 = vmul.f32 %v2392, 0.6931472
      %v2394 = vmul.f32 -0.5, %v2255
      %v2395 = vadd.f32 %v2394, 1.0
      %v2396 = vmul.f32 %v2395, %v2255
      %v2397 = vand.u32 2147483647, %v2255
      %vm2398 = vcmp.lt.f32.partialorder %v2397, 0.0004427343
      %v2399 = vsel %vm2398, %v2396, %v2393
      %v2400 = vmul.f32 %v2264, %v1139
      %v2401 = vmul.f32 %v2273, %v1139
      %v2402 = vmul.f32 %v2282, %v1139
      %v2403 = vmul.f32 %v2291, %v1139
      %v2404 = vmul.f32 %v2300, %v1139
      %v2405 = vmul.f32 %v2309, %v1139
      %v2406 = vmul.f32 %v2318, %v1139
      %v2407 = vmul.f32 %v2327, %v1139
      %v2408 = vmul.f32 %v2336, %v1139
      %v2409 = vmul.f32 %v2345, %v1139
      %v2410 = vmul.f32 %v2354, %v1139
      %v2411 = vmul.f32 %v2363, %v1139
      %v2412 = vmul.f32 %v2372, %v1139
      %v2413 = vmul.f32 %v2381, %v1139
      %v2414 = vmul.f32 %v2390, %v1139
      %v2415 = vmul.f32 %v2399, %v1139
      %v2416 = vsel %vm2208, %v2160, %v2400
      %v2417 = vsel %vm2209, %v2161, %v2401
      %v2418 = vsel %vm2210, %v2162, %v2402
      %v2419 = vsel %vm2211, %v2163, %v2403
      %v2420 = vsel %vm2212, %v2164, %v2404
      %v2421 = vsel %vm2213, %v2165, %v2405
      %v2422 = vsel %vm2214, %v2166, %v2406
      %v2423 = vsel %vm2215, %v2167, %v2407
      %v2424 = vsel %vm2216, %v2168, %v2408
      %v2425 = vsel %vm2217, %v2169, %v2409
      %v2426 = vsel %vm2218, %v2170, %v2410
      %v2427 = vsel %vm2219, %v2171, %v2411
      %v2428 = vsel %vm2220, %v2172, %v2412
      %v2429 = vsel %vm2221, %v2173, %v2413
      %v2430 = vsel %vm2222, %v2174, %v2414
      %v2431 = vsel %vm2223, %v2175, %v2415
      %v2432 = vld [vmem:[%s11] sm:$0xff]
      %v2433 = vld [vmem:[%s11 + $0x8] sm:$0xff]
      %v2434 = vld [vmem:[%s11 + $0x10] sm:$0xff]
      %v2435 = vld [vmem:[%s11 + $0x18] sm:$0xff]
      %v2436 = vld [vmem:[%s11 + $0x20] sm:$0xff]
      %v2437 = vld [vmem:[%s11 + $0x28] sm:$0xff]
      %v2438 = vld [vmem:[%s11 + $0x30] sm:$0xff]
      %v2439 = vld [vmem:[%s11 + $0x38] sm:$0xff]
      %v2440 = vld [vmem:[%s12] sm:$0x1]
      %v2442 = vlaneseq
      %v2443 = vshrl.u32 %v2442, 7
      %v2444 = vsub.s32 0, %v2443
      %v2445 = vrot.slane %v2440, %v2444
      %v2448 = vsel %vm1187, %v2416, 0
      %v2451 = vsel %vm1187, %v2417, 0
      %v2454 = vsel %vm1187, %v2418, 0
      %v2457 = vsel %vm1187, %v2419, 0
      %v2460 = vsel %vm1187, %v2420, 0
      %v2463 = vsel %vm1187, %v2421, 0
      %v2466 = vsel %vm1187, %v2422, 0
      %v2469 = vsel %vm1187, %v2423, 0
      %v2472 = vsel %vm1187, %v2424, 0
      %v2475 = vsel %vm1187, %v2425, 0
      %v2478 = vsel %vm1187, %v2426, 0
      %v2481 = vsel %vm1187, %v2427, 0
      %v2484 = vsel %vm1187, %v2428, 0
      %v2487 = vsel %vm1187, %v2429, 0
      %v2490 = vsel %vm1187, %v2430, 0
      %v2493 = vsel %vm1187, %v2431, 0
      %2495 = vmatprep.subr.mxu0 0.0
      %2496 = vmatpush1.msra.mxu0 %v2432
      %2497 = vmatprep.subr.mxu0 0.0
      %2498 = vmatpush1.msra.mxu0 %v2433
      %2499 = vmatprep.subr.mxu0 0.0
      %2500 = vmatpush1.msra.mxu0 %v2434
      %2501 = vmatprep.subr.mxu0 0.0
      %2502 = vmatpush1.msra.mxu0 %v2435
      %2503 = vmatprep.subr.mxu0 0.0
      %2504 = vmatpush1.msra.mxu0 %v2436
      %2505 = vmatprep.subr.mxu0 0.0
      %2506 = vmatpush1.msra.mxu0 %v2437
      %2507 = vmatprep.subr.mxu0 0.0
      %2508 = vmatpush1.msra.mxu0 %v2438
      %2509 = vmatprep.subr.mxu0 0.0
      %2510 = vmatpush1.msra.mxu0 %v2439
      %2511 = vmatprep.subr.mxu0 0.0
      %2512 = vmatpush1.msra.mxu0 0.0
      %2513 = vmatprep.subr.mxu0 0.0
      %2514 = vmatpush1.msra.mxu0 0.0
      %2515 = vmatprep.subr.mxu0 0.0
      %2516 = vmatpush1.msra.mxu0 0.0
      %2517 = vmatprep.subr.mxu0 0.0
      %2518 = vmatpush1.msra.mxu0 0.0
      %2519 = vmatprep.subr.mxu0 0.0
      %2520 = vmatpush1.msra.mxu0 0.0
      %2521 = vmatprep.subr.mxu0 0.0
      %2522 = vmatpush1.msra.mxu0 0.0
      %2523 = vmatprep.subr.mxu0 0.0
      %2524 = vmatpush1.msra.mxu0 0.0
      %2525 = vmatprep.subr.mxu0 0.0
      %2526 = vmatpush1.msra.mxu0 0.0
      %2527 = vmatprep.subr.mxu0 0.0
      %2528 = vmatpush1.msra.mxu0 0.0
      %2529 = vmatprep.subr.mxu0 0.0
      %2530 = vmatpush1.msra.mxu0 0.0
      %2531 = vmatprep.subr.mxu0 0.0
      %2532 = vmatpush1.msra.mxu0 0.0
      %2533 = vmatprep.subr.mxu0 0.0
      %2534 = vmatpush1.msra.mxu0 0.0
      %2535 = vmatprep.subr.mxu0 0.0
      %2536 = vmatpush1.msra.mxu0 0.0
      %2537 = vmatprep.subr.mxu0 0.0
      %2538 = vmatpush1.msra.mxu0 0.0
      %2539 = vmatprep.subr.mxu0 0.0
      %2540 = vmatpush1.msra.mxu0 0.0
      %2541 = vmatprep.subr.mxu0 0.0
      %2542 = vmatpush1.msra.mxu0 0.0
      %2543 = vmatprep.subr.mxu0 0.0
      %2544 = vmatpush1.msra.mxu0 0.0
      %2545 = vmatprep.subr.mxu0 0.0
      %2546 = vmatpush1.msra.mxu0 0.0
      %2547 = vmatprep.subr.mxu0 0.0
      %2548 = vmatpush1.msra.mxu0 0.0
      %2549 = vmatprep.subr.mxu0 0.0
      %2550 = vmatpush1.msra.mxu0 0.0
      %2551 = vmatprep.subr.mxu0 0.0
      %2552 = vmatpush1.msra.mxu0 0.0
      %2553 = vmatprep.subr.mxu0 0.0
      %2554 = vmatpush1.msra.mxu0 0.0
      %2555 = vmatprep.subr.mxu0 0.0
      %2556 = vmatpush1.msra.mxu0 0.0
      %2557 = vmatprep.subr.mxu0 0.0
      %2558 = vmatpush1.msra.mxu0 0.0
      %2559 = vmatprep.mubr.f32.mxu0 0.0
      %2560 = vmatmul.mubr.f32.gmra.mrb[0].mxu0 %v2448
      %v2561 = vpop.f32.mrb[0].mxu0
      %v2562 = vadd.f32 %v2445, %v2561
      %v2563 = vpop.f32.mrb[0].mxu0
      %2564 = vmatprep.mubr.f32.mxu0 0.0
      %2565 = vmatmul.mubr.f32.gmra.mrb[0].mxu0 %v2451
      %v2566 = vpop.f32.mrb[0].mxu0
      %v2567 = vadd.f32 %v2445, %v2566
      %v2568 = vpop.f32.mrb[0].mxu0
      %2569 = vmatprep.mubr.f32.mxu0 0.0
      %2570 = vmatmul.mubr.f32.gmra.mrb[0].mxu0 %v2454
      %v2571 = vpop.f32.mrb[0].mxu0
      %v2572 = vadd.f32 %v2445, %v2571
      %v2573 = vpop.f32.mrb[0].mxu0
      %2574 = vmatprep.mubr.f32.mxu0 0.0
      %2575 = vmatmul.mubr.f32.gmra.mrb[0].mxu0 %v2457
      %v2576 = vpop.f32.mrb[0].mxu0
      %v2577 = vadd.f32 %v2445, %v2576
      %v2578 = vpop.f32.mrb[0].mxu0
      %2579 = vmatprep.mubr.f32.mxu0 0.0
      %2580 = vmatmul.mubr.f32.gmra.mrb[0].mxu0 %v2460
      %v2581 = vpop.f32.mrb[0].mxu0
      %v2582 = vadd.f32 %v2445, %v2581
      %v2583 = vpop.f32.mrb[0].mxu0
      %2584 = vmatprep.mubr.f32.mxu0 0.0
      %2585 = vmatmul.mubr.f32.gmra.mrb[0].mxu0 %v2463
      %v2586 = vpop.f32.mrb[0].mxu0
      %v2587 = vadd.f32 %v2445, %v2586
      %v2588 = vpop.f32.mrb[0].mxu0
      %2589 = vmatprep.mubr.f32.mxu0 0.0
      %2590 = vmatmul.mubr.f32.gmra.mrb[0].mxu0 %v2466
      %v2591 = vpop.f32.mrb[0].mxu0
      %v2592 = vadd.f32 %v2445, %v2591
      %v2593 = vpop.f32.mrb[0].mxu0
      %2594 = vmatprep.mubr.f32.mxu0 0.0
      %2595 = vmatmul.mubr.f32.gmra.mrb[0].mxu0 %v2469
      %v2596 = vpop.f32.mrb[0].mxu0
      %v2597 = vadd.f32 %v2445, %v2596
      %v2598 = vpop.f32.mrb[0].mxu0
      %2599 = vmatprep.mubr.f32.mxu0 0.0
      %2600 = vmatmul.mubr.f32.gmra.mrb[0].mxu0 %v2472
      %v2601 = vpop.f32.mrb[0].mxu0
      %v2602 = vadd.f32 %v2445, %v2601
      %v2603 = vpop.f32.mrb[0].mxu0
      %2604 = vmatprep.mubr.f32.mxu0 0.0
      %2605 = vmatmul.mubr.f32.gmra.mrb[0].mxu0 %v2475
      %v2606 = vpop.f32.mrb[0].mxu0
      %v2607 = vadd.f32 %v2445, %v2606
      %v2608 = vpop.f32.mrb[0].mxu0
      %2609 = vmatprep.mubr.f32.mxu0 0.0
      %2610 = vmatmul.mubr.f32.gmra.mrb[0].mxu0 %v2478
      %v2611 = vpop.f32.mrb[0].mxu0
      %v2612 = vadd.f32 %v2445, %v2611
      %v2613 = vpop.f32.mrb[0].mxu0
      %2614 = vmatprep.mubr.f32.mxu0 0.0
      %2615 = vmatmul.mubr.f32.gmra.mrb[0].mxu0 %v2481
      %v2616 = vpop.f32.mrb[0].mxu0
      %v2617 = vadd.f32 %v2445, %v2616
      %v2618 = vpop.f32.mrb[0].mxu0
      %2619 = vmatprep.mubr.f32.mxu0 0.0
      %2620 = vmatmul.mubr.f32.gmra.mrb[0].mxu0 %v2484
      %v2621 = vpop.f32.mrb[0].mxu0
      %v2622 = vadd.f32 %v2445, %v2621
      %v2623 = vpop.f32.mrb[0].mxu0
      %2624 = vmatprep.mubr.f32.mxu0 0.0
      %2625 = vmatmul.mubr.f32.gmra.mrb[0].mxu0 %v2487
      %v2626 = vpop.f32.mrb[0].mxu0
      %v2627 = vadd.f32 %v2445, %v2626
      %v2628 = vpop.f32.mrb[0].mxu0
      %2629 = vmatprep.mubr.f32.mxu0 0.0
      %2630 = vmatmul.mubr.f32.gmra.mrb[0].mxu0 %v2490
      %v2631 = vpop.f32.mrb[0].mxu0
      %v2632 = vadd.f32 %v2445, %v2631
      %v2633 = vpop.f32.mrb[0].mxu0
      %2634 = vmatprep.mubr.f32.mxu0 0.0
      %2635 = vmatmul.mubr.f32.gmra.mrb[0].mxu0 %v2493
      %v2636 = vpop.f32.mrb[0].mxu0
      %v2637 = vadd.f32 %v2445, %v2636
      %v2638 = vpop.f32.mrb[0].mxu0
      %2639 = vdwg.mxu0
      %vm2640 = vcmask 130048
      %2641 = vst.msk [vmem:[%s464] sm:$0xff] %vm2640, %v2562
      %2642 = vst.msk [vmem:[%s464 + $0x8] sm:$0xff] %vm2640, %v2567
      %2643 = vst.msk [vmem:[%s464 + $0x10] sm:$0xff] %vm2640, %v2572
      %2644 = vst.msk [vmem:[%s464 + $0x18] sm:$0xff] %vm2640, %v2577
      %2645 = vst.msk [vmem:[%s464 + $0x20] sm:$0xff] %vm2640, %v2582
      %2646 = vst.msk [vmem:[%s464 + $0x28] sm:$0xff] %vm2640, %v2587
      %2647 = vst.msk [vmem:[%s464 + $0x30] sm:$0xff] %vm2640, %v2592
      %2648 = vst.msk [vmem:[%s464 + $0x38] sm:$0xff] %vm2640, %v2597
      %2649 = vst.msk [vmem:[%s464 + $0x40] sm:$0xff] %vm2640, %v2602
      %2650 = vst.msk [vmem:[%s464 + $0x48] sm:$0xff] %vm2640, %v2607
      %2651 = vst.msk [vmem:[%s464 + $0x50] sm:$0xff] %vm2640, %v2612
      %2652 = vst.msk [vmem:[%s464 + $0x58] sm:$0xff] %vm2640, %v2617
      %2653 = vst.msk [vmem:[%s464 + $0x60] sm:$0xff] %vm2640, %v2622
      %2654 = vst.msk [vmem:[%s464 + $0x68] sm:$0xff] %vm2640, %v2627
      %2655 = vst.msk [vmem:[%s464 + $0x70] sm:$0xff] %vm2640, %v2632
      %2656 = vst.msk [vmem:[%s464 + $0x78] sm:$0xff] %vm2640, %v2637
      %s2657 = smul.u32 16, %s24
      %p2658 = scmp.lt.s32.totalorder %s2657, 47
      %s2659 = scalar_select %p2658, %s2657, 47
      %s2660 = smul.addr %s2659, 8
      %s2661 = scalar_lea.vmem %s13, %s2660
      // Predicated region
      $region73: #{tpu_custom_call.1} parent=71 // pred_check
        %p2662 = pneg %p325
      $region74: #{tpu_custom_call.1} parent=71 // pred_check_branch
        %2664 = sbr.rel (%p2662) target = $region76
      $region75: #{tpu_custom_call.1} parent=71 // pred_region
        %s2665 = smul.u32 16, %s24
      $region76: #{tpu_custom_call.1} parent=71 // pred_fallthru
        _
    $region72: #{tpu_custom_call.1} parent=5 // pred_fallthru
      _
    %p2666 = scmp.le.s32.totalorder 2, %s19
    // Predicated region
    $region77: #{tpu_custom_call.1} parent=5 // pred_check
      %p2667 = pneg %p2666
    $region78: #{tpu_custom_call.1} parent=5 // pred_check_branch
      %2669 = sbr.rel (%p2667) target = $region80
    $region79: #{tpu_custom_call.1} parent=5 // pred_region
      %s2670 = ssub.s32 %s19, 2
      // Predicated region
      $region81: #{tpu_custom_call.1} parent=79 // pred_check
        %p2671 = pneg %p331
      $region82: #{tpu_custom_call.1} parent=79 // pred_check_branch
        %2673 = sbr.rel (%p2671) target = $region84
      $region83: #{tpu_custom_call.1} parent=79 // pred_region
        %s2674 = smul.u32 16, %s25
        %p2675 = scmp.lt.s32.totalorder %s2674, 47
        %s2676 = scalar_select %p2675, %s2674, 47
        %s2677 = smul.addr %s2676, 8
        %s2678 = scalar_lea.vmem %s13, %s2677
      $region84: #{tpu_custom_call.1} parent=79 // pred_fallthru
        _
    $region80: #{tpu_custom_call.1} parent=5 // pred_fallthru
      _
  $region6: #{tpu_custom_call.1} parent=0 // loop_footer
    %s23 = sadd.s32 1, %s19
  $region7: #{tpu_custom_call.1} parent=0 // loop_footer_branch
    %18 = sbr.rel target = $region3
  $region8: #{tpu_custom_call.1} parent=0 // loop_exit
    _

</llo_original>
